<compile_context>
chip_gen: v5e
topology: v5e:2x2
jax: 0.10.0
libtpu: 0.0.40
codegen_flags: <defaults>
</compile_context>

<pallas_src>
import functools

import jax
import jax.numpy as jnp
from jax.experimental import pallas as pl
from jax.experimental.pallas import tpu as pltpu


_COUT_PAD = 24  # 21 (deeplab) + 1 (unet) + 1 (vit) padded to a sublane multiple


# ---------------------------------------------------------------------------
# Pallas kernel: fused 3-head 3x3 conv + merge_output
# ---------------------------------------------------------------------------
def _fused_conv_merge_kernel(x_ref, w_ref, b_ref, o_ref, *, th, w_pad,
                             n_deeplab, vit_row):
    # x_ref: (1, 1, Cin, (th+4)*w_pad)  flattened, spatially zero-padded tile
    #        (2 halo rows top/bottom, 1 halo col left/right; w_pad = W+2)
    # w_ref: (9, COUT_PAD, Cin)         per-tap fused conv weights
    # b_ref: (COUT_PAD, 1)              fused bias (f32)
    # o_ref: (1, n_deeplab, th*w_pad)   merged output, lane-dense spatial axis
    q = th * w_pad          # flattened output positions for this tile
    base = 2 * w_pad        # first "center" row of the padded tile
    cout_pad = w_ref.shape[1]

    acc = jnp.zeros((cout_pad, q), jnp.float32)
    # 3x3 conv == 9 shifted (Cout,Cin)x(Cin,q) matmul accumulations.
    for oi in (-1, 0, 1):
        for oj in (-1, 0, 1):
            tap = (oi + 1) * 3 + (oj + 1)
            start = base + oi * w_pad + oj          # static lane offset
            win = x_ref[0, 0, :, start:start + q]   # (Cin, q)
            acc = acc + jnp.dot(w_ref[tap], win,
                                preferred_element_type=jnp.float32)
    acc = acc + b_ref[...]

    # merge_output: (deeplab_out + vit_out) / 2, vit (1 ch) broadcast over 21.
    merged = (acc[:n_deeplab, :] + acc[vit_row:vit_row + 1, :]) * 0.5
    o_ref[0] = merged.astype(o_ref.dtype)


# ---------------------------------------------------------------------------
# Host-side wrapper
# ---------------------------------------------------------------------------
def _resolve_tile_rows(H, W, cin, cout_pad, tile_rows=None,
                       budget_bytes=8 * 1024 * 1024):
    """Pick rows-per-tile so the double-buffered working set stays small."""
    w_pad = W + 2

    def legal(th):
        if H % th:
            return False
        # last dim of the out block must be 128-aligned unless it is full-dim
        if th != H and (th * w_pad) % 128:
            return False
        return True

    def vmem_bytes(th):
        l = (th + 4) * w_pad
        q = th * w_pad
        cin_pad = max(cin, 8)
        # 2x-buffered input tile + 2x-buffered output tile + f32 accumulator
        return (2 * cin_pad * l + 2 * cout_pad * q + cout_pad * q) * 4

    if tile_rows is not None:
        if not legal(tile_rows):
            raise ValueError(f"illegal tile_rows={tile_rows} for H={H}, W={W}")
        return tile_rows

    candidates = [th for th in range(1, H + 1) if legal(th)]
    fitting = [th for th in candidates if vmem_bytes(th) <= budget_bytes]
    if fitting:
        return max(fitting)
    return min(candidates)   # fallback; may need a raised VMEM limit


def _pack_fused_weights(weights, biases, cout_pad=_COUT_PAD):
    """Concatenate per-head (Cout_i, Cin, 3, 3) weights -> (9, COUT_PAD, Cin)."""
    w = jnp.concatenate(weights, axis=0)                 # (23, Cin, 3, 3)
    b = jnp.concatenate(biases, axis=0)                  # (23,)
    cout, cin = w.shape[0], w.shape[1]
    w_taps = jnp.transpose(w, (2, 3, 0, 1)).reshape(9, cout, cin)
    w_taps = jnp.pad(w_taps, ((0, 0), (0, cout_pad - cout), (0, 0)))
    b_col = jnp.pad(b, (0, cout_pad - cout)).reshape(cout_pad, 1)
    return w_taps, b_col.astype(jnp.float32)


def fused_heads_and_merge(x, w_taps, bias, *, n_deeplab, vit_row,
                          tile_rows=None, compute_dtype=None):
    """Fused deeplab/unet/vit conv heads + merge_output in one Pallas pass."""
    N, Cin, H, W = x.shape
    n_taps, cout_pad, cin_w = w_taps.shape
    assert n_taps == 9 and cin_w == Cin

    w_pad = W + 2
    th = _resolve_tile_rows(H, W, Cin, cout_pad, tile_rows)
    T = H // th
    L = (th + 4) * w_pad
    q = th * w_pad

    cdt = compute_dtype if compute_dtype is not None else x.dtype
    # Cheap host-side glue: zero-pad (2 rows top/bottom, 1 col each side),
    # slice per-H-tile halos, flatten the trailing spatial dims.
    xp = jnp.pad(x, ((0, 0), (0, 0), (2, 2), (1, 1))).astype(cdt)
    if T == 1:
        tiles = xp[:, None]
    else:
        tiles = jnp.stack(
            [xp[:, :, t * th: t * th + th + 4, :] for t in range(T)], axis=1)
    tiles = tiles.reshape(N, T, Cin, L)

    kernel = functools.partial(
        _fused_conv_merge_kernel, th=th, w_pad=w_pad,
        n_deeplab=n_deeplab, vit_row=vit_row)

    out_flat = pl.pallas_call(
        kernel,
        out_shape=jax.ShapeDtypeStruct((N, n_deeplab, H * w_pad), x.dtype),
        grid=(N, T),
        in_specs=[
            pl.BlockSpec((1, 1, Cin, L), lambda n, t: (n, t, 0, 0)),
            # weights / bias: full-array, grid-invariant (stay resident)
            pl.BlockSpec((9, cout_pad, Cin), lambda n, t: (0, 0, 0)),
            pl.BlockSpec((cout_pad, 1), lambda n, t: (0, 0)),
        ],
        out_specs=pl.BlockSpec((1, n_deeplab, q), lambda n, t: (n, 0, t)),
        compiler_params=pltpu.CompilerParams(
            dimension_semantics=("parallel", "parallel")),
    )(tiles, w_taps.astype(cdt), bias.astype(jnp.float32))

    # drop the 2 padded columns per row -> NCHW output (no transpose needed)
    out = out_flat.reshape(N, n_deeplab, H, w_pad)[:, :, :, 1:W + 1]
    return out


# ---------------------------------------------------------------------------
# FusionModel
# ---------------------------------------------------------------------------
class FusionModelPallas:
    """JAX/Pallas port of FusionModel.forward.

    forward(x):
        deeplab_out = deeplab(x)['out']   # (N, 21, H, W)  [stand-in head]
        unet_out    = unetplusplus(x)     # (N, 1, H, W)   [computed, unused]
        vit_out     = trans_unet(x)       # (N, 1, H, W)   [stand-in head]
        out         = (deeplab_out + vit_out) / 2   # channel broadcast
        return {'out': out}
    All three heads + merge run in one fused Pallas kernel.
    """

    DEEPLAB_CLASSES = 21   # torchvision deeplabv3_resnet50 default
    SEG_CLASSES = 1        # UnetPlusPlus / TransUNet num_classes

    def __init__(self, in_channels=3, dtype=jnp.float32, seed=42):
        key = jax.random.PRNGKey(seed)
        ks = jax.random.split(key, 10)

        def conv_init(kw, kb, cout, cin):
            fan_in = cin * 9
            w = jax.random.normal(kw, (cout, cin, 3, 3), dtype) / jnp.sqrt(fan_in)
            b = 0.01 * jax.random.normal(kb, (cout,), dtype)
            return w, b

        # stand-in backbone heads (deterministic)
        self.deeplab_w, self.deeplab_b = conv_init(
            ks[0], ks[1], self.DEEPLAB_CLASSES, in_channels)
        self.unet_w, self.unet_b = conv_init(
            ks[2], ks[3], self.SEG_CLASSES, in_channels)
        self.vit_w, self.vit_b = conv_init(
            ks[4], ks[5], self.SEG_CLASSES, in_channels)

        # conv1 / conv2 from __init__ (defined but never used in forward(),
        # matching the reference module)
        self.conv1_w, self.conv1_b = conv_init(ks[6], ks[7], 128, 2)
        self.conv2_w, self.conv2_b = conv_init(ks[8], ks[9], 1, 128)

        # fuse the three heads into a single (9, COUT_PAD, Cin) weight tensor:
        # rows 0..20 deeplab, 21 unet (discarded), 22 vit, 23 zero pad.
        self._w_taps, self._bias = _pack_fused_weights(
            [self.deeplab_w, self.unet_w, self.vit_w],
            [self.deeplab_b, self.unet_b, self.vit_b])

    def __call__(self, x, tile_rows=None, compute_dtype=None):
        out = fused_heads_and_merge(
            x, self._w_taps, self._bias,
            n_deeplab=self.DEEPLAB_CLASSES,
            vit_row=self.DEEPLAB_CLASSES + self.SEG_CLASSES,
            tile_rows=tile_rows, compute_dtype=compute_dtype)
        return {"out": out}


# ---------------------------------------------------------------------------
# Plain-JAX reference (for the self-test only)
# ---------------------------------------------------------------------------
def _conv3x3_ref(x, w, b):
    y = jax.lax.conv_general_dilated(
        x.astype(jnp.float32), w.astype(jnp.float32),
        window_strides=(1, 1), padding=((1, 1), (1, 1)),
        dimension_numbers=("NCHW", "OIHW", "NCHW"),
        precision=jax.lax.Precision.HIGHEST)
    return y + b.astype(jnp.float32)[None, :, None, None]


# ---------------------------------------------------------------------------
if __name__ == "__main__":
    key = jax.random.PRNGKey(0)
    k1, k2 = jax.random.split(key)

    model = FusionModelPallas(in_channels=3)

    # --- test 1: small RGB input, single spatial tile ---
    x = jax.random.normal(k1, (2, 3, 16, 16), dtype=jnp.float32)
    result = model(x)
    out = jax.block_until_ready(result["out"])
    assert out.shape == (2, FusionModelPallas.DEEPLAB_CLASSES, 16, 16), out.shape
    assert out.dtype == jnp.float32

    dl = _conv3x3_ref(x, model.deeplab_w, model.deeplab_b)
    vt = _conv3x3_ref(x, model.vit_w, model.vit_b)
    expected = (dl + vt) * 0.5
    err = float(jnp.max(jnp.abs(out - expected)))
    # tolerance covers possible reduced-precision MXU passes for f32 matmuls
    assert err < 5e-2, f"max abs err {err}"

    # --- test 2: exercise the H-tiling path (W+2 = 128 -> lane-dense tiles) ---
    x2 = jax.random.normal(k2, (1, 3, 16, 126), dtype=jnp.float32)
    out2 = jax.block_until_ready(model(x2, tile_rows=8)["out"])
    dl2 = _conv3x3_ref(x2, model.deeplab_w, model.deeplab_b)
    vt2 = _conv3x3_ref(x2, model.vit_w, model.vit_b)
    err2 = float(jnp.max(jnp.abs(out2 - (dl2 + vt2) * 0.5)))
    assert out2.shape == (1, 21, 16, 126), out2.shape
    assert err2 < 5e-2, f"max abs err (tiled) {err2}"

    print("KERNEL_OK")
</pallas_src>

<mosaic_0001>
module attributes {stable_mosaic.version = 11 : i64} {
  func.func @_fused_conv_merge_kernel(%arg0: i32, %arg1: i32, %arg2: memref<1x1x3x360xf32, #tpu.memory_space<vmem>>, %arg3: memref<9x24x3xf32, #tpu.memory_space<vmem>>, %arg4: memref<24x1xf32, #tpu.memory_space<vmem>>, %arg5: memref<1x21x288xf32, #tpu.memory_space<vmem>>) attributes {dimension_semantics = [#tpu.dimension_semantics<parallel>, #tpu.dimension_semantics<parallel>], iteration_bounds = array<i64: 2, 1>, scalar_prefetch = 0 : i64, scratch_operands = 0 : i64, tpu.core_type = #tpu.core_type<tc>, window_params = [{transform_indices = @transform_0, window_bounds = array<i64: 1, 1, 3, 360>}, {pipeline_mode = #tpu.pipeline_mode<synchronous>, transform_indices = @transform_1, window_bounds = array<i64: 9, 24, 3>}, {pipeline_mode = #tpu.pipeline_mode<synchronous>, transform_indices = @transform_2, window_bounds = array<i64: 24, 1>}, {transform_indices = @transform_3, window_bounds = array<i64: 1, 21, 288>}]} {
    %cst = arith.constant 0.000000e+00 : f32
    %0 = vector.broadcast %cst : f32 to vector<24x288xf32>
    %c0 = arith.constant 0 : index
    %c0_0 = arith.constant 0 : index
    %c0_1 = arith.constant 0 : index
    %c17 = arith.constant 17 : index
    %1 = vector.load %arg2[%c0, %c0_0, %c0_1, %c17] : memref<1x1x3x360xf32, #tpu.memory_space<vmem>>, vector<1x1x3x288xf32>
    %2 = vector.shape_cast %1 : vector<1x1x3x288xf32> to vector<3x288xf32>
    %c0_2 = arith.constant 0 : index
    %c0_3 = arith.constant 0 : index
    %c0_4 = arith.constant 0 : index
    %3 = vector.load %arg3[%c0_2, %c0_3, %c0_4] : memref<9x24x3xf32, #tpu.memory_space<vmem>>, vector<1x24x3xf32>
    %4 = vector.shape_cast %3 : vector<1x24x3xf32> to vector<24x3xf32>
    %cst_5 = arith.constant dense<0.000000e+00> : vector<24x288xf32>
    %5 = tpu.matmul %4, %2, %cst_5 {dimension_numbers = #tpu.dot_dimension_numbers<[1], [0], [0], [1], [0, 0, 1, 1], [], []>} : vector<24x3xf32>, vector<3x288xf32>, vector<24x288xf32> -> vector<24x288xf32>
    %6 = arith.addf %0, %5 : vector<24x288xf32>
    %c0_6 = arith.constant 0 : index
    %c0_7 = arith.constant 0 : index
    %c0_8 = arith.constant 0 : index
    %c18 = arith.constant 18 : index
    %7 = vector.load %arg2[%c0_6, %c0_7, %c0_8, %c18] : memref<1x1x3x360xf32, #tpu.memory_space<vmem>>, vector<1x1x3x288xf32>
    %8 = vector.shape_cast %7 : vector<1x1x3x288xf32> to vector<3x288xf32>
    %c1 = arith.constant 1 : index
    %c0_9 = arith.constant 0 : index
    %c0_10 = arith.constant 0 : index
    %9 = vector.load %arg3[%c1, %c0_9, %c0_10] : memref<9x24x3xf32, #tpu.memory_space<vmem>>, vector<1x24x3xf32>
    %10 = vector.shape_cast %9 : vector<1x24x3xf32> to vector<24x3xf32>
    %cst_11 = arith.constant dense<0.000000e+00> : vector<24x288xf32>
    %11 = tpu.matmul %10, %8, %cst_11 {dimension_numbers = #tpu.dot_dimension_numbers<[1], [0], [0], [1], [0, 0, 1, 1], [], []>} : vector<24x3xf32>, vector<3x288xf32>, vector<24x288xf32> -> vector<24x288xf32>
    %12 = arith.addf %6, %11 : vector<24x288xf32>
    %c0_12 = arith.constant 0 : index
    %c0_13 = arith.constant 0 : index
    %c0_14 = arith.constant 0 : index
    %c19 = arith.constant 19 : index
    %13 = vector.load %arg2[%c0_12, %c0_13, %c0_14, %c19] : memref<1x1x3x360xf32, #tpu.memory_space<vmem>>, vector<1x1x3x288xf32>
    %14 = vector.shape_cast %13 : vector<1x1x3x288xf32> to vector<3x288xf32>
    %c2 = arith.constant 2 : index
    %c0_15 = arith.constant 0 : index
    %c0_16 = arith.constant 0 : index
    %15 = vector.load %arg3[%c2, %c0_15, %c0_16] : memref<9x24x3xf32, #tpu.memory_space<vmem>>, vector<1x24x3xf32>
    %16 = vector.shape_cast %15 : vector<1x24x3xf32> to vector<24x3xf32>
    %cst_17 = arith.constant dense<0.000000e+00> : vector<24x288xf32>
    %17 = tpu.matmul %16, %14, %cst_17 {dimension_numbers = #tpu.dot_dimension_numbers<[1], [0], [0], [1], [0, 0, 1, 1], [], []>} : vector<24x3xf32>, vector<3x288xf32>, vector<24x288xf32> -> vector<24x288xf32>
    %18 = arith.addf %12, %17 : vector<24x288xf32>
    %c0_18 = arith.constant 0 : index
    %c0_19 = arith.constant 0 : index
    %c0_20 = arith.constant 0 : index
    %c35 = arith.constant 35 : index
    %19 = vector.load %arg2[%c0_18, %c0_19, %c0_20, %c35] : memref<1x1x3x360xf32, #tpu.memory_space<vmem>>, vector<1x1x3x288xf32>
    %20 = vector.shape_cast %19 : vector<1x1x3x288xf32> to vector<3x288xf32>
    %c3 = arith.constant 3 : index
    %c0_21 = arith.constant 0 : index
    %c0_22 = arith.constant 0 : index
    %21 = vector.load %arg3[%c3, %c0_21, %c0_22] : memref<9x24x3xf32, #tpu.memory_space<vmem>>, vector<1x24x3xf32>
    %22 = vector.shape_cast %21 : vector<1x24x3xf32> to vector<24x3xf32>
    %cst_23 = arith.constant dense<0.000000e+00> : vector<24x288xf32>
    %23 = tpu.matmul %22, %20, %cst_23 {dimension_numbers = #tpu.dot_dimension_numbers<[1], [0], [0], [1], [0, 0, 1, 1], [], []>} : vector<24x3xf32>, vector<3x288xf32>, vector<24x288xf32> -> vector<24x288xf32>
    %24 = arith.addf %18, %23 : vector<24x288xf32>
    %c0_24 = arith.constant 0 : index
    %c0_25 = arith.constant 0 : index
    %c0_26 = arith.constant 0 : index
    %c36 = arith.constant 36 : index
    %25 = vector.load %arg2[%c0_24, %c0_25, %c0_26, %c36] : memref<1x1x3x360xf32, #tpu.memory_space<vmem>>, vector<1x1x3x288xf32>
    %26 = vector.shape_cast %25 : vector<1x1x3x288xf32> to vector<3x288xf32>
    %c4 = arith.constant 4 : index
    %c0_27 = arith.constant 0 : index
    %c0_28 = arith.constant 0 : index
    %27 = vector.load %arg3[%c4, %c0_27, %c0_28] : memref<9x24x3xf32, #tpu.memory_space<vmem>>, vector<1x24x3xf32>
    %28 = vector.shape_cast %27 : vector<1x24x3xf32> to vector<24x3xf32>
    %cst_29 = arith.constant dense<0.000000e+00> : vector<24x288xf32>
    %29 = tpu.matmul %28, %26, %cst_29 {dimension_numbers = #tpu.dot_dimension_numbers<[1], [0], [0], [1], [0, 0, 1, 1], [], []>} : vector<24x3xf32>, vector<3x288xf32>, vector<24x288xf32> -> vector<24x288xf32>
    %30 = arith.addf %24, %29 : vector<24x288xf32>
    %c0_30 = arith.constant 0 : index
    %c0_31 = arith.constant 0 : index
    %c0_32 = arith.constant 0 : index
    %c37 = arith.constant 37 : index
    %31 = vector.load %arg2[%c0_30, %c0_31, %c0_32, %c37] : memref<1x1x3x360xf32, #tpu.memory_space<vmem>>, vector<1x1x3x288xf32>
    %32 = vector.shape_cast %31 : vector<1x1x3x288xf32> to vector<3x288xf32>
    %c5 = arith.constant 5 : index
    %c0_33 = arith.constant 0 : index
    %c0_34 = arith.constant 0 : index
    %33 = vector.load %arg3[%c5, %c0_33, %c0_34] : memref<9x24x3xf32, #tpu.memory_space<vmem>>, vector<1x24x3xf32>
    %34 = vector.shape_cast %33 : vector<1x24x3xf32> to vector<24x3xf32>
    %cst_35 = arith.constant dense<0.000000e+00> : vector<24x288xf32>
    %35 = tpu.matmul %34, %32, %cst_35 {dimension_numbers = #tpu.dot_dimension_numbers<[1], [0], [0], [1], [0, 0, 1, 1], [], []>} : vector<24x3xf32>, vector<3x288xf32>, vector<24x288xf32> -> vector<24x288xf32>
    %36 = arith.addf %30, %35 : vector<24x288xf32>
    %c0_36 = arith.constant 0 : index
    %c0_37 = arith.constant 0 : index
    %c0_38 = arith.constant 0 : index
    %c53 = arith.constant 53 : index
    %37 = vector.load %arg2[%c0_36, %c0_37, %c0_38, %c53] : memref<1x1x3x360xf32, #tpu.memory_space<vmem>>, vector<1x1x3x288xf32>
    %38 = vector.shape_cast %37 : vector<1x1x3x288xf32> to vector<3x288xf32>
    %c6 = arith.constant 6 : index
    %c0_39 = arith.constant 0 : index
    %c0_40 = arith.constant 0 : index
    %39 = vector.load %arg3[%c6, %c0_39, %c0_40] : memref<9x24x3xf32, #tpu.memory_space<vmem>>, vector<1x24x3xf32>
    %40 = vector.shape_cast %39 : vector<1x24x3xf32> to vector<24x3xf32>
    %cst_41 = arith.constant dense<0.000000e+00> : vector<24x288xf32>
    %41 = tpu.matmul %40, %38, %cst_41 {dimension_numbers = #tpu.dot_dimension_numbers<[1], [0], [0], [1], [0, 0, 1, 1], [], []>} : vector<24x3xf32>, vector<3x288xf32>, vector<24x288xf32> -> vector<24x288xf32>
    %42 = arith.addf %36, %41 : vector<24x288xf32>
    %c0_42 = arith.constant 0 : index
    %c0_43 = arith.constant 0 : index
    %c0_44 = arith.constant 0 : index
    %c54 = arith.constant 54 : index
    %43 = vector.load %arg2[%c0_42, %c0_43, %c0_44, %c54] : memref<1x1x3x360xf32, #tpu.memory_space<vmem>>, vector<1x1x3x288xf32>
    %44 = vector.shape_cast %43 : vector<1x1x3x288xf32> to vector<3x288xf32>
    %c7 = arith.constant 7 : index
    %c0_45 = arith.constant 0 : index
    %c0_46 = arith.constant 0 : index
    %45 = vector.load %arg3[%c7, %c0_45, %c0_46] : memref<9x24x3xf32, #tpu.memory_space<vmem>>, vector<1x24x3xf32>
    %46 = vector.shape_cast %45 : vector<1x24x3xf32> to vector<24x3xf32>
    %cst_47 = arith.constant dense<0.000000e+00> : vector<24x288xf32>
    %47 = tpu.matmul %46, %44, %cst_47 {dimension_numbers = #tpu.dot_dimension_numbers<[1], [0], [0], [1], [0, 0, 1, 1], [], []>} : vector<24x3xf32>, vector<3x288xf32>, vector<24x288xf32> -> vector<24x288xf32>
    %48 = arith.addf %42, %47 : vector<24x288xf32>
    %c0_48 = arith.constant 0 : index
    %c0_49 = arith.constant 0 : index
    %c0_50 = arith.constant 0 : index
    %c55 = arith.constant 55 : index
    %49 = vector.load %arg2[%c0_48, %c0_49, %c0_50, %c55] : memref<1x1x3x360xf32, #tpu.memory_space<vmem>>, vector<1x1x3x288xf32>
    %50 = vector.shape_cast %49 : vector<1x1x3x288xf32> to vector<3x288xf32>
    %c8 = arith.constant 8 : index
    %c0_51 = arith.constant 0 : index
    %c0_52 = arith.constant 0 : index
    %51 = vector.load %arg3[%c8, %c0_51, %c0_52] : memref<9x24x3xf32, #tpu.memory_space<vmem>>, vector<1x24x3xf32>
    %52 = vector.shape_cast %51 : vector<1x24x3xf32> to vector<24x3xf32>
    %cst_53 = arith.constant dense<0.000000e+00> : vector<24x288xf32>
    %53 = tpu.matmul %52, %50, %cst_53 {dimension_numbers = #tpu.dot_dimension_numbers<[1], [0], [0], [1], [0, 0, 1, 1], [], []>} : vector<24x3xf32>, vector<3x288xf32>, vector<24x288xf32> -> vector<24x288xf32>
    %54 = arith.addf %48, %53 : vector<24x288xf32>
    %c0_54 = arith.constant 0 : index
    %c0_55 = arith.constant 0 : index
    %55 = vector.load %arg4[%c0_54, %c0_55] : memref<24x1xf32, #tpu.memory_space<vmem>>, vector<24x1xf32>
    %56 = vector.broadcast %55 : vector<24x1xf32> to vector<24x288xf32>
    %57 = arith.addf %54, %56 : vector<24x288xf32>
    %58 = vector.extract_strided_slice %57 {offsets = [0, 0], sizes = [21, 288], strides = [1, 1]} : vector<24x288xf32> to vector<21x288xf32>
    %59 = vector.extract_strided_slice %57 {offsets = [22, 0], sizes = [1, 288], strides = [1, 1]} : vector<24x288xf32> to vector<1x288xf32>
    %60 = vector.broadcast %59 : vector<1x288xf32> to vector<21x288xf32>
    %61 = arith.addf %58, %60 : vector<21x288xf32>
    %cst_56 = arith.constant 5.000000e-01 : f32
    %62 = vector.broadcast %cst_56 : f32 to vector<21x288xf32>
    %63 = arith.mulf %61, %62 : vector<21x288xf32>
    %c0_57 = arith.constant 0 : index
    %c0_58 = arith.constant 0 : index
    %c0_59 = arith.constant 0 : index
    %64 = vector.load %arg5[%c0_57, %c0_58, %c0_59] : memref<1x21x288xf32, #tpu.memory_space<vmem>>, vector<1x21x288xf32>
    %65 = vector.shape_cast %64 : vector<1x21x288xf32> to vector<21x288xf32>
    %66 = vector.shape_cast %63 : vector<21x288xf32> to vector<1x21x288xf32>
    tpu.vector_store %arg5[%c0_57, %c0_58, %c0_59], %66 {strides = array<i32>} : memref<1x21x288xf32, #tpu.memory_space<vmem>>, vector<1x21x288xf32>,
    return
  }
  func.func @transform_0(%arg0: i32, %arg1: i32) -> (i32, i32, i32, i32) {
    %c0_i32 = arith.constant 0 : i32
    %c0_i32_0 = arith.constant 0 : i32
    %c0_i32_1 = arith.constant 0 : i32
    return %arg0, %arg1, %c0_i32, %c0_i32_0 : i32, i32, i32, i32
  }
  func.func @transform_1(%arg0: i32, %arg1: i32) -> (i32, i32, i32) {
    %c0_i32 = arith.constant 0 : i32
    %c0_i32_0 = arith.constant 0 : i32
    %c0_i32_1 = arith.constant 0 : i32
    %c0_i32_2 = arith.constant 0 : i32
    return %c0_i32, %c0_i32_0, %c0_i32_1 : i32, i32, i32
  }
  func.func @transform_2(%arg0: i32, %arg1: i32) -> (i32, i32) {
    %c0_i32 = arith.constant 0 : i32
    %c0_i32_0 = arith.constant 0 : i32
    %c0_i32_1 = arith.constant 0 : i32
    return %c0_i32, %c0_i32_0 : i32, i32
  }
  func.func @transform_3(%arg0: i32, %arg1: i32) -> (i32, i32, i32) {
    %c0_i32 = arith.constant 0 : i32
    %c0_i32_0 = arith.constant 0 : i32
    return %arg0, %c0_i32, %arg1 : i32, i32, i32
  }
}

</mosaic_0001>

<llo_original>
// kernel: tpu_custom_call.1
$region0: #{tpu_custom_call.1}
  #allocation0 [shape = 'u32[]', space=smem, size = 0x4, offset = 0x4, fixed_abs, tag = 'smem constant byte address 0x4 - core index']
  #allocation1 [shape = 'u32[72,128]{1,0:T(1,128)}', space=vmem, size = 0x9000, scoped, tag = 'internal scratch']
  %s0 = inlined_call_operand.vmem [shape: f32[2,1,3,360], index: 0, kind: input, shape index: {}]
  %s1 = inlined_call_operand.vmem [shape: f32[9,24,3], index: 1, kind: input, shape index: {}]
  %s2 = inlined_call_operand.vmem [shape: f32[24,1], index: 2, kind: input, shape index: {}]
  %s3 = inlined_call_operand.vmem [shape: f32[2,21,288], index: 3, kind: output, shape index: {}]
  %s4 = sld [smem:[#allocation0]]
  $region45: #{tpu_custom_call.1} parent=0
    _
  %s6 = ssub.s32 1, %s4
  %s7 = scalar_select 0, %s6, %s4
  loop: start=0, step=1, limit=4
  $region2: #{tpu_custom_call.1} parent=0 // loop_pre_header
    _
  $region3: #{tpu_custom_call.1} parent=0 // loop_header
    %s9 = sphi 0, %s13
    %p10 = scmp.ge.s32.totalorder %s9, 4
    %s16 = sphi 0, %s28
    %s17 = sphi 0, %s24
    %s18 = sphi 0, %s16
    %s19 = sphi 0, %s17
    %s20 = sphi 0, %s18
    %s21 = sphi 0, %s19
    %s33 = sphi 0, %s35
    %s36 = sphi 0, %s33
    %s37 = sphi 0, %s36
    %s53 = sphi 0, %s37
    %s57 = sphi 0, %s57
    %s59 = sphi 0, %s57
    %s60 = sphi 0, %s59
    %s74 = sphi 0, %s60
    %s78 = sphi 0, %s78
    %s80 = sphi 0, %s78
    %s81 = sphi 0, %s80
    %s95 = sphi 0, %s81
    %s103 = sphi 0, %s105
    %s106 = sphi 0, %s103
    %s107 = sphi 0, %s106
    %s123 = sphi 0, %s107
  $region4: #{tpu_custom_call.1} parent=0 // loop_header_branch
    %12 = sbr.rel (%p10) target = $region8
  $region5: #{tpu_custom_call.1} parent=0 // loop_body
    %s14 = ssub.s32 %s9, 1
    %s15 = ssub.s32 %s9, 2
    %s22 = sadd.s32 1, %s17
    %p23 = scmp.ge.s32.totalorder %s22, 1
    %s24 = scalar_select %p23, 0, %s22
    %s25 = sadd.s32 1, %s16
    %s26 = scalar_select %p23, %s25, %s16
    %p27 = scmp.ge.s32.totalorder %s26, 2
    %s28 = scalar_select %p27, 0, %s26
    %s29 = ssub.s32 %s16, %s28
    %s30 = ssub.s32 %s17, %s24
    %s31 = sor.u32 %s29, %s30
    %p32 = scmp.eq.s32.totalorder %s31, 0
    %s34 = sadd.s32 %s33, 1
    %s35 = scalar_select %p32, %s33, %s34
    %p38 = pneg %p32
    %p39 = scmp.eq.s32.totalorder %s9, 1
    %p40 = por %p38, %p39
    %p41 = scmp.ne.s32.totalorder %s33, %s36
    %p42 = scmp.eq.s32.totalorder %s9, 0
    %p43 = por %p41, %p42
    %p44 = scmp.ne.s32.totalorder %s33, %s36
    %p45 = scmp.eq.s32.totalorder %s14, 1
    %p46 = por %p44, %p45
    %p47 = scmp.ne.s32.totalorder %s36, %s37
    %p48 = scmp.eq.s32.totalorder %s14, 0
    %p49 = por %p47, %p48
    %p50 = scmp.ne.s32.totalorder %s36, %s37
    %p51 = scmp.eq.s32.totalorder %s15, 1
    %p52 = por %p50, %p51
    %p54 = scmp.ne.s32.totalorder %s37, %s53
    %p55 = scmp.eq.s32.totalorder %s15, 0
    %p56 = por %p54, %p55
    %s58 = sadd.s32 %s57, 1
    %p61 = scmp.eq.s32.totalorder %s9, 1
    %p62 = scmp.ne.s32.totalorder %s57, %s59
    %p63 = scmp.eq.s32.totalorder %s9, 0
    %p64 = por %p62, %p63
    %p65 = scmp.ne.s32.totalorder %s57, %s59
    %p66 = scmp.eq.s32.totalorder %s14, 1
    %p67 = por %p65, %p66
    %p68 = scmp.ne.s32.totalorder %s59, %s60
    %p69 = scmp.eq.s32.totalorder %s14, 0
    %p70 = por %p68, %p69
    %p71 = scmp.ne.s32.totalorder %s59, %s60
    %p72 = scmp.eq.s32.totalorder %s15, 1
    %p73 = por %p71, %p72
    %p75 = scmp.ne.s32.totalorder %s60, %s74
    %p76 = scmp.eq.s32.totalorder %s15, 0
    %p77 = por %p75, %p76
    %s79 = sadd.s32 %s78, 1
    %p82 = scmp.eq.s32.totalorder %s9, 1
    %p83 = scmp.ne.s32.totalorder %s78, %s80
    %p84 = scmp.eq.s32.totalorder %s9, 0
    %p85 = por %p83, %p84
    %p86 = scmp.ne.s32.totalorder %s78, %s80
    %p87 = scmp.eq.s32.totalorder %s14, 1
    %p88 = por %p86, %p87
    %p89 = scmp.ne.s32.totalorder %s80, %s81
    %p90 = scmp.eq.s32.totalorder %s14, 0
    %p91 = por %p89, %p90
    %p92 = scmp.ne.s32.totalorder %s80, %s81
    %p93 = scmp.eq.s32.totalorder %s15, 1
    %p94 = por %p92, %p93
    %p96 = scmp.ne.s32.totalorder %s81, %s95
    %p97 = scmp.eq.s32.totalorder %s15, 0
    %p98 = por %p96, %p97
    %s99 = ssub.s32 %s16, %s28
    %s100 = ssub.s32 %s17, %s24
    %s101 = sor.u32 %s99, %s100
    %p102 = scmp.eq.s32.totalorder %s101, 0
    %s104 = sadd.s32 %s103, 1
    %s105 = scalar_select %p102, %s103, %s104
    %p108 = pneg %p102
    %p109 = scmp.eq.s32.totalorder %s9, 1
    %p110 = por %p108, %p109
    %p111 = scmp.ne.s32.totalorder %s103, %s106
    %p112 = scmp.eq.s32.totalorder %s9, 0
    %p113 = por %p111, %p112
    %p114 = scmp.ne.s32.totalorder %s103, %s106
    %p115 = scmp.eq.s32.totalorder %s14, 1
    %p116 = por %p114, %p115
    %p117 = scmp.ne.s32.totalorder %s106, %s107
    %p118 = scmp.eq.s32.totalorder %s14, 0
    %p119 = por %p117, %p118
    %p120 = scmp.ne.s32.totalorder %s106, %s107
    %p121 = scmp.eq.s32.totalorder %s15, 1
    %p122 = por %p120, %p121
    %p124 = scmp.ne.s32.totalorder %s107, %s123
    %p125 = scmp.eq.s32.totalorder %s15, 0
    %p126 = por %p124, %p125
    %p127 = scmp.le.s32.totalorder 1, %s9
    %p128 = scmp.lt.s32.totalorder %s9, 3
    %p129 = pnand %p127, %p128
    %p130 = pneg %p129
    // Predicated region
    $region9: #{tpu_custom_call.1} parent=5 // pred_check
      _
    $region10: #{tpu_custom_call.1} parent=5 // pred_check_branch
      %132 = sbr.rel (%p129) target = $region12
    $region11: #{tpu_custom_call.1} parent=5 // pred_region
      %s133 = ssub.s32 %s9, 1
      // Predicated region
      $region13: #{tpu_custom_call.1} parent=11 // pred_check
        %p134 = pneg %p70
      $region14: #{tpu_custom_call.1} parent=11 // pred_check_branch
        %136 = sbr.rel (%p134) target = $region16
      $region15: #{tpu_custom_call.1} parent=11 // pred_region
        _
      $region16: #{tpu_custom_call.1} parent=11 // pred_fallthru
        _
      // Predicated region
      $region17: #{tpu_custom_call.1} parent=11 // pred_check
        %p137 = pneg %p91
      $region18: #{tpu_custom_call.1} parent=11 // pred_check_branch
        %139 = sbr.rel (%p137) target = $region20
      $region19: #{tpu_custom_call.1} parent=11 // pred_region
        _
      $region20: #{tpu_custom_call.1} parent=11 // pred_fallthru
        _
    $region12: #{tpu_custom_call.1} parent=5 // pred_fallthru
      _
    %p140 = scmp.lt.s32.totalorder %s9, 2
    // Predicated region
    $region21: #{tpu_custom_call.1} parent=5 // pred_check
      %p141 = pneg %p140
    $region22: #{tpu_custom_call.1} parent=5 // pred_check_branch
      %143 = sbr.rel (%p141) target = $region24
    $region23: #{tpu_custom_call.1} parent=5 // pred_region
      // Predicated region
      $region25: #{tpu_custom_call.1} parent=23 // pred_check
        %p144 = pneg %p43
      $region26: #{tpu_custom_call.1} parent=23 // pred_check_branch
        %146 = sbr.rel (%p144) target = $region28
      $region27: #{tpu_custom_call.1} parent=23 // pred_region
        %p147 = scmp.lt.s32.totalorder %s16, 1
        %s148 = scalar_select %p147, %s16, 1
        %p149 = scmp.lt.s32.totalorder %s17, 0
        %s150 = scalar_select %p149, %s17, 0
        %s151 = smul.addr %s150, 3
        %s152 = smul.addr %s148, 3
        %s153 = sadd.s32 %s151, %s152
        %s154 = smul.addr %s153, 4
        %s155 = scalar_lea.vmem %s0, %s154
      $region28: #{tpu_custom_call.1} parent=23 // pred_fallthru
        _
    $region24: #{tpu_custom_call.1} parent=5 // pred_fallthru
      _
    %p156 = scmp.le.s32.totalorder 1, %s9
    %p157 = scmp.lt.s32.totalorder %s9, 3
    %p158 = pnand %p156, %p157
    %p159 = pneg %p158
    // Predicated region
    $region29: #{tpu_custom_call.1} parent=5 // pred_check
      _
    $region30: #{tpu_custom_call.1} parent=5 // pred_check_branch
      %161 = sbr.rel (%p158) target = $region32
    $region31: #{tpu_custom_call.1} parent=5 // pred_region
      %s162 = ssub.s32 %s9, 1
      %p163 = scmp.lt.s32.totalorder %s18, 1
      %s164 = scalar_select %p163, %s18, 1
      %p165 = scmp.lt.s32.totalorder %s19, 0
      %s166 = scalar_select %p165, %s19, 0
      %s167 = smul.addr %s166, 3
      %s168 = smul.addr %s164, 3
      %s169 = sadd.s32 %s167, %s168
      %s170 = smul.addr %s169, 4
      %s171 = scalar_lea.vmem %s0, %s170
      %p172 = pneg %p49
      %p173 = pneg %p46
      %p174 = pneg %p70
      %p175 = pneg %p67
      %p176 = pneg %p91
      %p177 = pneg %p88
      %p178 = pneg %p119
      %p179 = pneg %p116
      %s180 = smul.u32 3, %s19
      %p181 = scmp.lt.s32.totalorder %s18, 1
      %s182 = scalar_select %p181, %s18, 1
      %p183 = scmp.lt.s32.totalorder %s180, 2
      %s184 = scalar_select %p183, %s180, 2
      %s185 = smul.addr %s182, 9
      %s186 = sadd.s32 %s184, %s185
      %s187 = smul.addr %s186, 8
      %s188 = scalar_lea.vmem %s3, %s187
      %p189 = scmp.lt.s32.totalorder %s18, 1
      %s190 = scalar_select %p189, %s18, 1
      %p191 = scmp.lt.s32.totalorder %s19, 0
      %s192 = scalar_select %p191, %s19, 0
      %s193 = smul.addr %s192, 3
      %s194 = smul.addr %s190, 3
      %s195 = sadd.s32 %s193, %s194
      %s196 = smul.addr %s195, 4
      %s197 = scalar_lea.vmem %s0, %s196
      %s198 = smul.u32 3, %s19
      %p199 = scmp.lt.s32.totalorder %s18, 1
      %s200 = scalar_select %p199, %s18, 1
      %p201 = scmp.lt.s32.totalorder %s198, 2
      %s202 = scalar_select %p201, %s198, 2
      %s203 = smul.addr %s200, 9
      %s204 = sadd.s32 %s202, %s203
      %s205 = smul.addr %s204, 8
      %s206 = scalar_lea.vmem %s3, %s205
      %s207 = smul.u32 3, %s19
      %v208 = vld [vmem:[%s197] sm:$0x77]
      %v209 = vld [vmem:[%s197 + $0x8] sm:$0x7]
      %v210 = vld [vmem:[%s1] sm:$0xff]
      %v211 = vld [vmem:[%s1 + $0x8] sm:$0xff]
      %v212 = vld [vmem:[%s1 + $0x10] sm:$0xff]
      %s213 = scalar_lea.vmem %s1, 24
      %v214 = vld [vmem:[%s213] sm:$0xff]
      %v215 = vld [vmem:[%s213 + $0x8] sm:$0xff]
      %v216 = vld [vmem:[%s213 + $0x10] sm:$0xff]
      %219 = vst [vmem:[#allocation1] ss:$2 sm:$0xff] %v208
      %s220 = scalar_lea.vmem [#allocation1], 16
      %221 = vst [vmem:[%s220] ss:$2 sm:$0xff] %v209
      %v222 = vld.sshfl [vmem:[#allocation1] sm:$0xff pattern:$0x75316420]
      %v223 = vld.sshfl [vmem:[#allocation1 + $0x8] sm:$0xff pattern:$0x75316420]
      %v224 = vld.sshfl [vmem:[#allocation1 + $0x10] sm:$0xff pattern:$0x75316420]
      %225 = vrot.lane.b32.xlu0 %v222, 110
      %v226 = vpop.permute.xlu0 %225
      %227 = vrot.lane.b32.xlu0 %v223, 110
      %v228 = vpop.permute.xlu0 %227
      %229 = vrot.lane.b32.xlu0 %v224, 110
      %v230 = vpop.permute.xlu0 %229
      %vm231 = vcmask 900096
      %v232 = vsel %vm231, %v226, %v228
      %v233 = vsel %vm231, %v228, %v230
      %vm234 = vcmask 23552
      %v236 = vsel %vm234, %v214, 0
      %v239 = vsel %vm234, %v215, 0
      %v242 = vsel %vm234, %v216, 0
      %vm244 = vcmask 1042432
      %v245 = vsel %vm244, %v232, 0
      %v247 = vsel %vm244, %v233, 0
      %v249 = vsel %vm244, %v230, 0
      %251 = vmatpush.msra.mxu0 0.0
      %252 = vmatpush.msra.mxu0 0.0
      %253 = vmatpush.msra.mxu0 0.0
      %254 = vmatpush.msra.mxu0 0.0
      %255 = vmatpush.msra.mxu0 0.0
      %256 = vmatpush.msra.mxu0 0.0
      %257 = vmatpush.msra.mxu0 0.0
      %258 = vmatpush.msra.mxu0 0.0
      %259 = vmatpush.msra.mxu0 0.0
      %260 = vmatpush.msra.mxu0 0.0
      %261 = vmatpush.msra.mxu0 0.0
      %262 = vmatpush.msra.mxu0 0.0
      %263 = vmatpush.msra.mxu0 0.0
      %264 = vmatpush.msra.mxu0 0.0
      %265 = vmatpush.msra.mxu0 0.0
      %266 = vmatpush.msra.mxu0 %v245
      %267 = vmatmul.f32.gmra.mxu0 %v236
      %v268 = vpop.f32.mrf.mxu0
      %v269 = vadd.f32 0.0, %v268
      %270 = vmatmul.f32.gmra.mxu0 %v239
      %v271 = vpop.f32.mrf.mxu0
      %v272 = vadd.f32 0.0, %v271
      %273 = vmatmul.f32.gmra.mxu0 %v242
      %v274 = vpop.f32.mrf.mxu0
      %v275 = vadd.f32 0.0, %v274
      %276 = vdwg.mxu0
      %277 = vmatpush.msra.mxu0 0.0
      %278 = vmatpush.msra.mxu0 0.0
      %279 = vmatpush.msra.mxu0 0.0
      %280 = vmatpush.msra.mxu0 0.0
      %281 = vmatpush.msra.mxu0 0.0
      %282 = vmatpush.msra.mxu0 0.0
      %283 = vmatpush.msra.mxu0 0.0
      %284 = vmatpush.msra.mxu0 0.0
      %285 = vmatpush.msra.mxu0 0.0
      %286 = vmatpush.msra.mxu0 0.0
      %287 = vmatpush.msra.mxu0 0.0
      %288 = vmatpush.msra.mxu0 0.0
      %289 = vmatpush.msra.mxu0 0.0
      %290 = vmatpush.msra.mxu0 0.0
      %291 = vmatpush.msra.mxu0 0.0
      %292 = vmatpush.msra.mxu0 %v247
      %293 = vmatmul.f32.gmra.mxu0 %v236
      %v294 = vpop.f32.mrf.mxu0
      %v295 = vadd.f32 0.0, %v294
      %296 = vmatmul.f32.gmra.mxu0 %v239
      %v297 = vpop.f32.mrf.mxu0
      %v298 = vadd.f32 0.0, %v297
      %299 = vmatmul.f32.gmra.mxu0 %v242
      %v300 = vpop.f32.mrf.mxu0
      %v301 = vadd.f32 0.0, %v300
      %302 = vdwg.mxu0
      %303 = vmatpush.msra.mxu0 0.0
      %304 = vmatpush.msra.mxu0 0.0
      %305 = vmatpush.msra.mxu0 0.0
      %306 = vmatpush.msra.mxu0 0.0
      %307 = vmatpush.msra.mxu0 0.0
      %308 = vmatpush.msra.mxu0 0.0
      %309 = vmatpush.msra.mxu0 0.0
      %310 = vmatpush.msra.mxu0 0.0
      %311 = vmatpush.msra.mxu0 0.0
      %312 = vmatpush.msra.mxu0 0.0
      %313 = vmatpush.msra.mxu0 0.0
      %314 = vmatpush.msra.mxu0 0.0
      %315 = vmatpush.msra.mxu0 0.0
      %316 = vmatpush.msra.mxu0 0.0
      %317 = vmatpush.msra.mxu0 0.0
      %318 = vmatpush.msra.mxu0 %v249
      %319 = vmatmul.f32.gmra.mxu0 %v236
      %v320 = vpop.f32.mrf.mxu0
      %v321 = vadd.f32 0.0, %v320
      %322 = vmatmul.f32.gmra.mxu0 %v239
      %v323 = vpop.f32.mrf.mxu0
      %v324 = vadd.f32 0.0, %v323
      %325 = vmatmul.f32.gmra.mxu0 %v242
      %v326 = vpop.f32.mrf.mxu0
      %v327 = vadd.f32 0.0, %v326
      %328 = vdwg.mxu0
      %329 = vst [vmem:[#allocation1] ss:$2 sm:$0xff] %v208
      %s330 = scalar_lea.vmem [#allocation1], 16
      %331 = vst [vmem:[%s330] ss:$2 sm:$0xff] %v209
      %v332 = vld.sshfl [vmem:[#allocation1] sm:$0xff pattern:$0x75316420]
      %v333 = vld.sshfl [vmem:[#allocation1 + $0x8] sm:$0xff pattern:$0x75316420]
      %v334 = vld.sshfl [vmem:[#allocation1 + $0x10] sm:$0xff pattern:$0x75316420]
      %335 = vrot.lane.b32.xlu0 %v332, 111
      %v336 = vpop.permute.xlu0 %335
      %337 = vrot.lane.b32.xlu0 %v333, 111
      %v338 = vpop.permute.xlu0 %337
      %339 = vrot.lane.b32.xlu0 %v334, 111
      %v340 = vpop.permute.xlu0 %339
      %vm341 = vcmask 908288
      %v342 = vsel %vm341, %v336, %v338
      %v343 = vsel %vm341, %v338, %v340
      %v345 = vsel %vm234, %v210, 0
      %v348 = vsel %vm234, %v211, 0
      %v351 = vsel %vm234, %v212, 0
      %v353 = vsel %vm244, %v342, 0
      %v355 = vsel %vm244, %v343, 0
      %v357 = vsel %vm244, %v340, 0
      %359 = vmatpush.msra.mxu0 0.0
      %360 = vmatpush.msra.mxu0 0.0
      %361 = vmatpush.msra.mxu0 0.0
      %362 = vmatpush.msra.mxu0 0.0
      %363 = vmatpush.msra.mxu0 0.0
      %364 = vmatpush.msra.mxu0 0.0
      %365 = vmatpush.msra.mxu0 0.0
      %366 = vmatpush.msra.mxu0 0.0
      %367 = vmatpush.msra.mxu0 0.0
      %368 = vmatpush.msra.mxu0 0.0
      %369 = vmatpush.msra.mxu0 0.0
      %370 = vmatpush.msra.mxu0 0.0
      %371 = vmatpush.msra.mxu0 0.0
      %372 = vmatpush.msra.mxu0 0.0
      %373 = vmatpush.msra.mxu0 0.0
      %374 = vmatpush.msra.mxu0 %v353
      %375 = vmatmul.f32.gmra.mxu0 %v345
      %v376 = vpop.f32.mrf.mxu0
      %v377 = vadd.f32 %v269, %v376
      %378 = vmatmul.f32.gmra.mxu0 %v348
      %v379 = vpop.f32.mrf.mxu0
      %v380 = vadd.f32 %v272, %v379
      %381 = vmatmul.f32.gmra.mxu0 %v351
      %v382 = vpop.f32.mrf.mxu0
      %v383 = vadd.f32 %v275, %v382
      %384 = vdwg.mxu0
      %385 = vmatpush.msra.mxu0 0.0
      %386 = vmatpush.msra.mxu0 0.0
      %387 = vmatpush.msra.mxu0 0.0
      %388 = vmatpush.msra.mxu0 0.0
      %389 = vmatpush.msra.mxu0 0.0
      %390 = vmatpush.msra.mxu0 0.0
      %391 = vmatpush.msra.mxu0 0.0
      %392 = vmatpush.msra.mxu0 0.0
      %393 = vmatpush.msra.mxu0 0.0
      %394 = vmatpush.msra.mxu0 0.0
      %395 = vmatpush.msra.mxu0 0.0
      %396 = vmatpush.msra.mxu0 0.0
      %397 = vmatpush.msra.mxu0 0.0
      %398 = vmatpush.msra.mxu0 0.0
      %399 = vmatpush.msra.mxu0 0.0
      %400 = vmatpush.msra.mxu0 %v355
      %401 = vmatmul.f32.gmra.mxu0 %v345
      %v402 = vpop.f32.mrf.mxu0
      %v403 = vadd.f32 %v295, %v402
      %404 = vmatmul.f32.gmra.mxu0 %v348
      %v405 = vpop.f32.mrf.mxu0
      %v406 = vadd.f32 %v298, %v405
      %407 = vmatmul.f32.gmra.mxu0 %v351
      %v408 = vpop.f32.mrf.mxu0
      %v409 = vadd.f32 %v301, %v408
      %410 = vdwg.mxu0
      %411 = vmatpush.msra.mxu0 0.0
      %412 = vmatpush.msra.mxu0 0.0
      %413 = vmatpush.msra.mxu0 0.0
      %414 = vmatpush.msra.mxu0 0.0
      %415 = vmatpush.msra.mxu0 0.0
      %416 = vmatpush.msra.mxu0 0.0
      %417 = vmatpush.msra.mxu0 0.0
      %418 = vmatpush.msra.mxu0 0.0
      %419 = vmatpush.msra.mxu0 0.0
      %420 = vmatpush.msra.mxu0 0.0
      %421 = vmatpush.msra.mxu0 0.0
      %422 = vmatpush.msra.mxu0 0.0
      %423 = vmatpush.msra.mxu0 0.0
      %424 = vmatpush.msra.mxu0 0.0
      %425 = vmatpush.msra.mxu0 0.0
      %426 = vmatpush.msra.mxu0 %v357
      %427 = vmatmul.f32.gmra.mxu0 %v345
      %v428 = vpop.f32.mrf.mxu0
      %v429 = vadd.f32 %v321, %v428
      %430 = vmatmul.f32.gmra.mxu0 %v348
      %v431 = vpop.f32.mrf.mxu0
      %v432 = vadd.f32 %v324, %v431
      %433 = vmatmul.f32.gmra.mxu0 %v351
      %v434 = vpop.f32.mrf.mxu0
      %v435 = vadd.f32 %v327, %v434
      %436 = vdwg.mxu0
      %v437 = vld [vmem:[%s197] sm:$0x77]
      %v438 = vld [vmem:[%s197 + $0x8] sm:$0x7]
      %s439 = scalar_lea.vmem %s1, 48
      %v440 = vld [vmem:[%s439] sm:$0xff]
      %v441 = vld [vmem:[%s439 + $0x8] sm:$0xff]
      %v442 = vld [vmem:[%s439 + $0x10] sm:$0xff]
      %445 = vst [vmem:[#allocation1] ss:$2 sm:$0xff] %v437
      %s446 = scalar_lea.vmem [#allocation1], 16
      %447 = vst [vmem:[%s446] ss:$2 sm:$0xff] %v438
      %v448 = vld.sshfl [vmem:[#allocation1] sm:$0xff pattern:$0x75316420]
      %v449 = vld.sshfl [vmem:[#allocation1 + $0x8] sm:$0xff pattern:$0x75316420]
      %v450 = vld.sshfl [vmem:[#allocation1 + $0x10] sm:$0xff pattern:$0x75316420]
      %451 = vrot.lane.b32.xlu0 %v448, 109
      %v452 = vpop.permute.xlu0 %451
      %453 = vrot.lane.b32.xlu0 %v449, 109
      %v454 = vpop.permute.xlu0 %453
      %455 = vrot.lane.b32.xlu0 %v450, 109
      %v456 = vpop.permute.xlu0 %455
      %vm457 = vcmask 891904
      %v458 = vsel %vm457, %v452, %v454
      %v459 = vsel %vm457, %v454, %v456
      %v461 = vsel %vm234, %v440, 0
      %v464 = vsel %vm234, %v441, 0
      %v467 = vsel %vm234, %v442, 0
      %v469 = vsel %vm244, %v458, 0
      %v471 = vsel %vm244, %v459, 0
      %v473 = vsel %vm244, %v456, 0
      %475 = vmatpush.msra.mxu0 0.0
      %476 = vmatpush.msra.mxu0 0.0
      %477 = vmatpush.msra.mxu0 0.0
      %478 = vmatpush.msra.mxu0 0.0
      %479 = vmatpush.msra.mxu0 0.0
      %480 = vmatpush.msra.mxu0 0.0
      %481 = vmatpush.msra.mxu0 0.0
      %482 = vmatpush.msra.mxu0 0.0
      %483 = vmatpush.msra.mxu0 0.0
      %484 = vmatpush.msra.mxu0 0.0
      %485 = vmatpush.msra.mxu0 0.0
      %486 = vmatpush.msra.mxu0 0.0
      %487 = vmatpush.msra.mxu0 0.0
      %488 = vmatpush.msra.mxu0 0.0
      %489 = vmatpush.msra.mxu0 0.0
      %490 = vmatpush.msra.mxu0 %v469
      %491 = vmatmul.f32.gmra.mxu0 %v461
      %v492 = vpop.f32.mrf.mxu0
      %v493 = vadd.f32 0.0, %v492
      %494 = vmatmul.f32.gmra.mxu0 %v464
      %v495 = vpop.f32.mrf.mxu0
      %v496 = vadd.f32 0.0, %v495
      %497 = vmatmul.f32.gmra.mxu0 %v467
      %v498 = vpop.f32.mrf.mxu0
      %v499 = vadd.f32 0.0, %v498
      %500 = vdwg.mxu0
      %501 = vmatpush.msra.mxu0 0.0
      %502 = vmatpush.msra.mxu0 0.0
      %503 = vmatpush.msra.mxu0 0.0
      %504 = vmatpush.msra.mxu0 0.0
      %505 = vmatpush.msra.mxu0 0.0
      %506 = vmatpush.msra.mxu0 0.0
      %507 = vmatpush.msra.mxu0 0.0
      %508 = vmatpush.msra.mxu0 0.0
      %509 = vmatpush.msra.mxu0 0.0
      %510 = vmatpush.msra.mxu0 0.0
      %511 = vmatpush.msra.mxu0 0.0
      %512 = vmatpush.msra.mxu0 0.0
      %513 = vmatpush.msra.mxu0 0.0
      %514 = vmatpush.msra.mxu0 0.0
      %515 = vmatpush.msra.mxu0 0.0
      %516 = vmatpush.msra.mxu0 %v471
      %517 = vmatmul.f32.gmra.mxu0 %v461
      %v518 = vpop.f32.mrf.mxu0
      %v519 = vadd.f32 0.0, %v518
      %520 = vmatmul.f32.gmra.mxu0 %v464
      %v521 = vpop.f32.mrf.mxu0
      %v522 = vadd.f32 0.0, %v521
      %523 = vmatmul.f32.gmra.mxu0 %v467
      %v524 = vpop.f32.mrf.mxu0
      %v525 = vadd.f32 0.0, %v524
      %526 = vdwg.mxu0
      %527 = vmatpush.msra.mxu0 0.0
      %528 = vmatpush.msra.mxu0 0.0
      %529 = vmatpush.msra.mxu0 0.0
      %530 = vmatpush.msra.mxu0 0.0
      %531 = vmatpush.msra.mxu0 0.0
      %532 = vmatpush.msra.mxu0 0.0
      %533 = vmatpush.msra.mxu0 0.0
      %534 = vmatpush.msra.mxu0 0.0
      %535 = vmatpush.msra.mxu0 0.0
      %536 = vmatpush.msra.mxu0 0.0
      %537 = vmatpush.msra.mxu0 0.0
      %538 = vmatpush.msra.mxu0 0.0
      %539 = vmatpush.msra.mxu0 0.0
      %540 = vmatpush.msra.mxu0 0.0
      %541 = vmatpush.msra.mxu0 0.0
      %542 = vmatpush.msra.mxu0 %v473
      %543 = vmatmul.f32.gmra.mxu0 %v461
      %v544 = vpop.f32.mrf.mxu0
      %v545 = vadd.f32 0.0, %v544
      %546 = vmatmul.f32.gmra.mxu0 %v464
      %v547 = vpop.f32.mrf.mxu0
      %v548 = vadd.f32 0.0, %v547
      %549 = vmatmul.f32.gmra.mxu0 %v467
      %v550 = vpop.f32.mrf.mxu0
      %v551 = vadd.f32 0.0, %v550
      %552 = vdwg.mxu0
      %v553 = vadd.f32 %v377, %v493
      %v554 = vadd.f32 %v403, %v519
      %v555 = vadd.f32 %v429, %v545
      %v556 = vadd.f32 %v380, %v496
      %v557 = vadd.f32 %v406, %v522
      %v558 = vadd.f32 %v432, %v548
      %v559 = vadd.f32 %v383, %v499
      %v560 = vadd.f32 %v409, %v525
      %v561 = vadd.f32 %v435, %v551
      %v562 = vld [vmem:[%s197] sm:$0x77]
      %v563 = vld [vmem:[%s197 + $0x8] sm:$0x7]
      %s564 = scalar_lea.vmem %s1, 72
      %v565 = vld [vmem:[%s564] sm:$0xff]
      %v566 = vld [vmem:[%s564 + $0x8] sm:$0xff]
      %v567 = vld [vmem:[%s564 + $0x10] sm:$0xff]
      %570 = vst [vmem:[#allocation1] ss:$2 sm:$0xff] %v562
      %s571 = scalar_lea.vmem [#allocation1], 16
      %572 = vst [vmem:[%s571] ss:$2 sm:$0xff] %v563
      %v573 = vld.sshfl [vmem:[#allocation1] sm:$0xff pattern:$0x75316420]
      %v574 = vld.sshfl [vmem:[#allocation1 + $0x8] sm:$0xff pattern:$0x75316420]
      %v575 = vld.sshfl [vmem:[#allocation1 + $0x10] sm:$0xff pattern:$0x75316420]
      %576 = vrot.lane.b32.xlu0 %v573, 93
      %v577 = vpop.permute.xlu0 %576
      %578 = vrot.lane.b32.xlu0 %v574, 93
      %v579 = vpop.permute.xlu0 %578
      %580 = vrot.lane.b32.xlu0 %v575, 93
      %v581 = vpop.permute.xlu0 %580
      %vm582 = vcmask 760832
      %v583 = vsel %vm582, %v577, %v579
      %v584 = vsel %vm582, %v579, %v581
      %v586 = vsel %vm234, %v565, 0
      %v589 = vsel %vm234, %v566, 0
      %v592 = vsel %vm234, %v567, 0
      %v594 = vsel %vm244, %v583, 0
      %v596 = vsel %vm244, %v584, 0
      %v598 = vsel %vm244, %v581, 0
      %600 = vmatpush.msra.mxu0 0.0
      %601 = vmatpush.msra.mxu0 0.0
      %602 = vmatpush.msra.mxu0 0.0
      %603 = vmatpush.msra.mxu0 0.0
      %604 = vmatpush.msra.mxu0 0.0
      %605 = vmatpush.msra.mxu0 0.0
      %606 = vmatpush.msra.mxu0 0.0
      %607 = vmatpush.msra.mxu0 0.0
      %608 = vmatpush.msra.mxu0 0.0
      %609 = vmatpush.msra.mxu0 0.0
      %610 = vmatpush.msra.mxu0 0.0
      %611 = vmatpush.msra.mxu0 0.0
      %612 = vmatpush.msra.mxu0 0.0
      %613 = vmatpush.msra.mxu0 0.0
      %614 = vmatpush.msra.mxu0 0.0
      %615 = vmatpush.msra.mxu0 %v594
      %616 = vmatmul.f32.gmra.mxu0 %v586
      %v617 = vpop.f32.mrf.mxu0
      %v618 = vadd.f32 0.0, %v617
      %619 = vmatmul.f32.gmra.mxu0 %v589
      %v620 = vpop.f32.mrf.mxu0
      %v621 = vadd.f32 0.0, %v620
      %622 = vmatmul.f32.gmra.mxu0 %v592
      %v623 = vpop.f32.mrf.mxu0
      %v624 = vadd.f32 0.0, %v623
      %625 = vdwg.mxu0
      %626 = vmatpush.msra.mxu0 0.0
      %627 = vmatpush.msra.mxu0 0.0
      %628 = vmatpush.msra.mxu0 0.0
      %629 = vmatpush.msra.mxu0 0.0
      %630 = vmatpush.msra.mxu0 0.0
      %631 = vmatpush.msra.mxu0 0.0
      %632 = vmatpush.msra.mxu0 0.0
      %633 = vmatpush.msra.mxu0 0.0
      %634 = vmatpush.msra.mxu0 0.0
      %635 = vmatpush.msra.mxu0 0.0
      %636 = vmatpush.msra.mxu0 0.0
      %637 = vmatpush.msra.mxu0 0.0
      %638 = vmatpush.msra.mxu0 0.0
      %639 = vmatpush.msra.mxu0 0.0
      %640 = vmatpush.msra.mxu0 0.0
      %641 = vmatpush.msra.mxu0 %v596
      %642 = vmatmul.f32.gmra.mxu0 %v586
      %v643 = vpop.f32.mrf.mxu0
      %v644 = vadd.f32 0.0, %v643
      %645 = vmatmul.f32.gmra.mxu0 %v589
      %v646 = vpop.f32.mrf.mxu0
      %v647 = vadd.f32 0.0, %v646
      %648 = vmatmul.f32.gmra.mxu0 %v592
      %v649 = vpop.f32.mrf.mxu0
      %v650 = vadd.f32 0.0, %v649
      %651 = vdwg.mxu0
      %652 = vmatpush.msra.mxu0 0.0
      %653 = vmatpush.msra.mxu0 0.0
      %654 = vmatpush.msra.mxu0 0.0
      %655 = vmatpush.msra.mxu0 0.0
      %656 = vmatpush.msra.mxu0 0.0
      %657 = vmatpush.msra.mxu0 0.0
      %658 = vmatpush.msra.mxu0 0.0
      %659 = vmatpush.msra.mxu0 0.0
      %660 = vmatpush.msra.mxu0 0.0
      %661 = vmatpush.msra.mxu0 0.0
      %662 = vmatpush.msra.mxu0 0.0
      %663 = vmatpush.msra.mxu0 0.0
      %664 = vmatpush.msra.mxu0 0.0
      %665 = vmatpush.msra.mxu0 0.0
      %666 = vmatpush.msra.mxu0 0.0
      %667 = vmatpush.msra.mxu0 %v598
      %668 = vmatmul.f32.gmra.mxu0 %v586
      %v669 = vpop.f32.mrf.mxu0
      %v670 = vadd.f32 0.0, %v669
      %671 = vmatmul.f32.gmra.mxu0 %v589
      %v672 = vpop.f32.mrf.mxu0
      %v673 = vadd.f32 0.0, %v672
      %674 = vmatmul.f32.gmra.mxu0 %v592
      %v675 = vpop.f32.mrf.mxu0
      %v676 = vadd.f32 0.0, %v675
      %677 = vdwg.mxu0
      %v678 = vadd.f32 %v553, %v618
      %v679 = vadd.f32 %v554, %v644
      %v680 = vadd.f32 %v555, %v670
      %v681 = vadd.f32 %v556, %v621
      %v682 = vadd.f32 %v557, %v647
      %v683 = vadd.f32 %v558, %v673
      %v684 = vadd.f32 %v559, %v624
      %v685 = vadd.f32 %v560, %v650
      %v686 = vadd.f32 %v561, %v676
      %v687 = vld [vmem:[%s197] sm:$0x77]
      %v688 = vld [vmem:[%s197 + $0x8] sm:$0x7]
      %s689 = scalar_lea.vmem %s1, 96
      %v690 = vld [vmem:[%s689] sm:$0xff]
      %v691 = vld [vmem:[%s689 + $0x8] sm:$0xff]
      %v692 = vld [vmem:[%s689 + $0x10] sm:$0xff]
      %695 = vst [vmem:[#allocation1] ss:$2 sm:$0xff] %v687
      %s696 = scalar_lea.vmem [#allocation1], 16
      %697 = vst [vmem:[%s696] ss:$2 sm:$0xff] %v688
      %v698 = vld.sshfl [vmem:[#allocation1] sm:$0xff pattern:$0x75316420]
      %v699 = vld.sshfl [vmem:[#allocation1 + $0x8] sm:$0xff pattern:$0x75316420]
      %v700 = vld.sshfl [vmem:[#allocation1 + $0x10] sm:$0xff pattern:$0x75316420]
      %701 = vrot.lane.b32.xlu0 %v698, 92
      %v702 = vpop.permute.xlu0 %701
      %703 = vrot.lane.b32.xlu0 %v699, 92
      %v704 = vpop.permute.xlu0 %703
      %705 = vrot.lane.b32.xlu0 %v700, 92
      %v706 = vpop.permute.xlu0 %705
      %vm707 = vcmask 752640
      %v708 = vsel %vm707, %v702, %v704
      %v709 = vsel %vm707, %v704, %v706
      %v711 = vsel %vm234, %v690, 0
      %v714 = vsel %vm234, %v691, 0
      %v717 = vsel %vm234, %v692, 0
      %v719 = vsel %vm244, %v708, 0
      %v721 = vsel %vm244, %v709, 0
      %v723 = vsel %vm244, %v706, 0
      %725 = vmatpush.msra.mxu0 0.0
      %726 = vmatpush.msra.mxu0 0.0
      %727 = vmatpush.msra.mxu0 0.0
      %728 = vmatpush.msra.mxu0 0.0
      %729 = vmatpush.msra.mxu0 0.0
      %730 = vmatpush.msra.mxu0 0.0
      %731 = vmatpush.msra.mxu0 0.0
      %732 = vmatpush.msra.mxu0 0.0
      %733 = vmatpush.msra.mxu0 0.0
      %734 = vmatpush.msra.mxu0 0.0
      %735 = vmatpush.msra.mxu0 0.0
      %736 = vmatpush.msra.mxu0 0.0
      %737 = vmatpush.msra.mxu0 0.0
      %738 = vmatpush.msra.mxu0 0.0
      %739 = vmatpush.msra.mxu0 0.0
      %740 = vmatpush.msra.mxu0 %v719
      %741 = vmatmul.f32.gmra.mxu0 %v711
      %v742 = vpop.f32.mrf.mxu0
      %v743 = vadd.f32 0.0, %v742
      %744 = vmatmul.f32.gmra.mxu0 %v714
      %v745 = vpop.f32.mrf.mxu0
      %v746 = vadd.f32 0.0, %v745
      %747 = vmatmul.f32.gmra.mxu0 %v717
      %v748 = vpop.f32.mrf.mxu0
      %v749 = vadd.f32 0.0, %v748
      %750 = vdwg.mxu0
      %751 = vmatpush.msra.mxu0 0.0
      %752 = vmatpush.msra.mxu0 0.0
      %753 = vmatpush.msra.mxu0 0.0
      %754 = vmatpush.msra.mxu0 0.0
      %755 = vmatpush.msra.mxu0 0.0
      %756 = vmatpush.msra.mxu0 0.0
      %757 = vmatpush.msra.mxu0 0.0
      %758 = vmatpush.msra.mxu0 0.0
      %759 = vmatpush.msra.mxu0 0.0
      %760 = vmatpush.msra.mxu0 0.0
      %761 = vmatpush.msra.mxu0 0.0
      %762 = vmatpush.msra.mxu0 0.0
      %763 = vmatpush.msra.mxu0 0.0
      %764 = vmatpush.msra.mxu0 0.0
      %765 = vmatpush.msra.mxu0 0.0
      %766 = vmatpush.msra.mxu0 %v721
      %767 = vmatmul.f32.gmra.mxu0 %v711
      %v768 = vpop.f32.mrf.mxu0
      %v769 = vadd.f32 0.0, %v768
      %770 = vmatmul.f32.gmra.mxu0 %v714
      %v771 = vpop.f32.mrf.mxu0
      %v772 = vadd.f32 0.0, %v771
      %773 = vmatmul.f32.gmra.mxu0 %v717
      %v774 = vpop.f32.mrf.mxu0
      %v775 = vadd.f32 0.0, %v774
      %776 = vdwg.mxu0
      %777 = vmatpush.msra.mxu0 0.0
      %778 = vmatpush.msra.mxu0 0.0
      %779 = vmatpush.msra.mxu0 0.0
      %780 = vmatpush.msra.mxu0 0.0
      %781 = vmatpush.msra.mxu0 0.0
      %782 = vmatpush.msra.mxu0 0.0
      %783 = vmatpush.msra.mxu0 0.0
      %784 = vmatpush.msra.mxu0 0.0
      %785 = vmatpush.msra.mxu0 0.0
      %786 = vmatpush.msra.mxu0 0.0
      %787 = vmatpush.msra.mxu0 0.0
      %788 = vmatpush.msra.mxu0 0.0
      %789 = vmatpush.msra.mxu0 0.0
      %790 = vmatpush.msra.mxu0 0.0
      %791 = vmatpush.msra.mxu0 0.0
      %792 = vmatpush.msra.mxu0 %v723
      %793 = vmatmul.f32.gmra.mxu0 %v711
      %v794 = vpop.f32.mrf.mxu0
      %v795 = vadd.f32 0.0, %v794
      %796 = vmatmul.f32.gmra.mxu0 %v714
      %v797 = vpop.f32.mrf.mxu0
      %v798 = vadd.f32 0.0, %v797
      %799 = vmatmul.f32.gmra.mxu0 %v717
      %v800 = vpop.f32.mrf.mxu0
      %v801 = vadd.f32 0.0, %v800
      %802 = vdwg.mxu0
      %v803 = vadd.f32 %v678, %v743
      %v804 = vadd.f32 %v679, %v769
      %v805 = vadd.f32 %v680, %v795
      %v806 = vadd.f32 %v681, %v746
      %v807 = vadd.f32 %v682, %v772
      %v808 = vadd.f32 %v683, %v798
      %v809 = vadd.f32 %v684, %v749
      %v810 = vadd.f32 %v685, %v775
      %v811 = vadd.f32 %v686, %v801
      %v812 = vld [vmem:[%s197] sm:$0x77]
      %v813 = vld [vmem:[%s197 + $0x8] sm:$0x7]
      %s814 = scalar_lea.vmem %s1, 120
      %v815 = vld [vmem:[%s814] sm:$0xff]
      %v816 = vld [vmem:[%s814 + $0x8] sm:$0xff]
      %v817 = vld [vmem:[%s814 + $0x10] sm:$0xff]
      %820 = vst [vmem:[#allocation1] ss:$2 sm:$0xff] %v812
      %s821 = scalar_lea.vmem [#allocation1], 16
      %822 = vst [vmem:[%s821] ss:$2 sm:$0xff] %v813
      %v823 = vld.sshfl [vmem:[#allocation1] sm:$0xff pattern:$0x75316420]
      %v824 = vld.sshfl [vmem:[#allocation1 + $0x8] sm:$0xff pattern:$0x75316420]
      %v825 = vld.sshfl [vmem:[#allocation1 + $0x10] sm:$0xff pattern:$0x75316420]
      %826 = vrot.lane.b32.xlu0 %v823, 91
      %v827 = vpop.permute.xlu0 %826
      %828 = vrot.lane.b32.xlu0 %v824, 91
      %v829 = vpop.permute.xlu0 %828
      %830 = vrot.lane.b32.xlu0 %v825, 91
      %v831 = vpop.permute.xlu0 %830
      %vm832 = vcmask 744448
      %v833 = vsel %vm832, %v827, %v829
      %v834 = vsel %vm832, %v829, %v831
      %v836 = vsel %vm234, %v815, 0
      %v839 = vsel %vm234, %v816, 0
      %v842 = vsel %vm234, %v817, 0
      %v844 = vsel %vm244, %v833, 0
      %v846 = vsel %vm244, %v834, 0
      %v848 = vsel %vm244, %v831, 0
      %850 = vmatpush.msra.mxu0 0.0
      %851 = vmatpush.msra.mxu0 0.0
      %852 = vmatpush.msra.mxu0 0.0
      %853 = vmatpush.msra.mxu0 0.0
      %854 = vmatpush.msra.mxu0 0.0
      %855 = vmatpush.msra.mxu0 0.0
      %856 = vmatpush.msra.mxu0 0.0
      %857 = vmatpush.msra.mxu0 0.0
      %858 = vmatpush.msra.mxu0 0.0
      %859 = vmatpush.msra.mxu0 0.0
      %860 = vmatpush.msra.mxu0 0.0
      %861 = vmatpush.msra.mxu0 0.0
      %862 = vmatpush.msra.mxu0 0.0
      %863 = vmatpush.msra.mxu0 0.0
      %864 = vmatpush.msra.mxu0 0.0
      %865 = vmatpush.msra.mxu0 %v844
      %866 = vmatmul.f32.gmra.mxu0 %v836
      %v867 = vpop.f32.mrf.mxu0
      %v868 = vadd.f32 0.0, %v867
      %869 = vmatmul.f32.gmra.mxu0 %v839
      %v870 = vpop.f32.mrf.mxu0
      %v871 = vadd.f32 0.0, %v870
      %872 = vmatmul.f32.gmra.mxu0 %v842
      %v873 = vpop.f32.mrf.mxu0
      %v874 = vadd.f32 0.0, %v873
      %875 = vdwg.mxu0
      %876 = vmatpush.msra.mxu0 0.0
      %877 = vmatpush.msra.mxu0 0.0
      %878 = vmatpush.msra.mxu0 0.0
      %879 = vmatpush.msra.mxu0 0.0
      %880 = vmatpush.msra.mxu0 0.0
      %881 = vmatpush.msra.mxu0 0.0
      %882 = vmatpush.msra.mxu0 0.0
      %883 = vmatpush.msra.mxu0 0.0
      %884 = vmatpush.msra.mxu0 0.0
      %885 = vmatpush.msra.mxu0 0.0
      %886 = vmatpush.msra.mxu0 0.0
      %887 = vmatpush.msra.mxu0 0.0
      %888 = vmatpush.msra.mxu0 0.0
      %889 = vmatpush.msra.mxu0 0.0
      %890 = vmatpush.msra.mxu0 0.0
      %891 = vmatpush.msra.mxu0 %v846
      %892 = vmatmul.f32.gmra.mxu0 %v836
      %v893 = vpop.f32.mrf.mxu0
      %v894 = vadd.f32 0.0, %v893
      %895 = vmatmul.f32.gmra.mxu0 %v839
      %v896 = vpop.f32.mrf.mxu0
      %v897 = vadd.f32 0.0, %v896
      %898 = vmatmul.f32.gmra.mxu0 %v842
      %v899 = vpop.f32.mrf.mxu0
      %v900 = vadd.f32 0.0, %v899
      %901 = vdwg.mxu0
      %902 = vmatpush.msra.mxu0 0.0
      %903 = vmatpush.msra.mxu0 0.0
      %904 = vmatpush.msra.mxu0 0.0
      %905 = vmatpush.msra.mxu0 0.0
      %906 = vmatpush.msra.mxu0 0.0
      %907 = vmatpush.msra.mxu0 0.0
      %908 = vmatpush.msra.mxu0 0.0
      %909 = vmatpush.msra.mxu0 0.0
      %910 = vmatpush.msra.mxu0 0.0
      %911 = vmatpush.msra.mxu0 0.0
      %912 = vmatpush.msra.mxu0 0.0
      %913 = vmatpush.msra.mxu0 0.0
      %914 = vmatpush.msra.mxu0 0.0
      %915 = vmatpush.msra.mxu0 0.0
      %916 = vmatpush.msra.mxu0 0.0
      %917 = vmatpush.msra.mxu0 %v848
      %918 = vmatmul.f32.gmra.mxu0 %v836
      %v919 = vpop.f32.mrf.mxu0
      %v920 = vadd.f32 0.0, %v919
      %921 = vmatmul.f32.gmra.mxu0 %v839
      %v922 = vpop.f32.mrf.mxu0
      %v923 = vadd.f32 0.0, %v922
      %924 = vmatmul.f32.gmra.mxu0 %v842
      %v925 = vpop.f32.mrf.mxu0
      %v926 = vadd.f32 0.0, %v925
      %927 = vdwg.mxu0
      %v928 = vadd.f32 %v803, %v868
      %v929 = vadd.f32 %v804, %v894
      %v930 = vadd.f32 %v805, %v920
      %v931 = vadd.f32 %v806, %v871
      %v932 = vadd.f32 %v807, %v897
      %v933 = vadd.f32 %v808, %v923
      %v934 = vadd.f32 %v809, %v874
      %v935 = vadd.f32 %v810, %v900
      %v936 = vadd.f32 %v811, %v926
      %v937 = vld [vmem:[%s197] sm:$0x77]
      %v938 = vld [vmem:[%s197 + $0x8] sm:$0x7]
      %s939 = scalar_lea.vmem %s1, 144
      %v940 = vld [vmem:[%s939] sm:$0xff]
      %v941 = vld [vmem:[%s939 + $0x8] sm:$0xff]
      %v942 = vld [vmem:[%s939 + $0x10] sm:$0xff]
      %945 = vst [vmem:[#allocation1] ss:$2 sm:$0xff] %v937
      %s946 = scalar_lea.vmem [#allocation1], 16
      %947 = vst [vmem:[%s946] ss:$2 sm:$0xff] %v938
      %v948 = vld.sshfl [vmem:[#allocation1] sm:$0xff pattern:$0x75316420]
      %v949 = vld.sshfl [vmem:[#allocation1 + $0x8] sm:$0xff pattern:$0x75316420]
      %v950 = vld.sshfl [vmem:[#allocation1 + $0x10] sm:$0xff pattern:$0x75316420]
      %951 = vrot.lane.b32.xlu0 %v948, 75
      %v952 = vpop.permute.xlu0 %951
      %953 = vrot.lane.b32.xlu0 %v949, 75
      %v954 = vpop.permute.xlu0 %953
      %955 = vrot.lane.b32.xlu0 %v950, 75
      %v956 = vpop.permute.xlu0 %955
      %vm957 = vcmask 613376
      %v958 = vsel %vm957, %v952, %v954
      %v959 = vsel %vm957, %v954, %v956
      %v961 = vsel %vm234, %v940, 0
      %v964 = vsel %vm234, %v941, 0
      %v967 = vsel %vm234, %v942, 0
      %v969 = vsel %vm244, %v958, 0
      %v971 = vsel %vm244, %v959, 0
      %v973 = vsel %vm244, %v956, 0
      %975 = vmatpush.msra.mxu0 0.0
      %976 = vmatpush.msra.mxu0 0.0
      %977 = vmatpush.msra.mxu0 0.0
      %978 = vmatpush.msra.mxu0 0.0
      %979 = vmatpush.msra.mxu0 0.0
      %980 = vmatpush.msra.mxu0 0.0
      %981 = vmatpush.msra.mxu0 0.0
      %982 = vmatpush.msra.mxu0 0.0
      %983 = vmatpush.msra.mxu0 0.0
      %984 = vmatpush.msra.mxu0 0.0
      %985 = vmatpush.msra.mxu0 0.0
      %986 = vmatpush.msra.mxu0 0.0
      %987 = vmatpush.msra.mxu0 0.0
      %988 = vmatpush.msra.mxu0 0.0
      %989 = vmatpush.msra.mxu0 0.0
      %990 = vmatpush.msra.mxu0 %v969
      %991 = vmatmul.f32.gmra.mxu0 %v961
      %v992 = vpop.f32.mrf.mxu0
      %v993 = vadd.f32 0.0, %v992
      %994 = vmatmul.f32.gmra.mxu0 %v964
      %v995 = vpop.f32.mrf.mxu0
      %v996 = vadd.f32 0.0, %v995
      %997 = vmatmul.f32.gmra.mxu0 %v967
      %v998 = vpop.f32.mrf.mxu0
      %v999 = vadd.f32 0.0, %v998
      %1000 = vdwg.mxu0
      %1001 = vmatpush.msra.mxu0 0.0
      %1002 = vmatpush.msra.mxu0 0.0
      %1003 = vmatpush.msra.mxu0 0.0
      %1004 = vmatpush.msra.mxu0 0.0
      %1005 = vmatpush.msra.mxu0 0.0
      %1006 = vmatpush.msra.mxu0 0.0
      %1007 = vmatpush.msra.mxu0 0.0
      %1008 = vmatpush.msra.mxu0 0.0
      %1009 = vmatpush.msra.mxu0 0.0
      %1010 = vmatpush.msra.mxu0 0.0
      %1011 = vmatpush.msra.mxu0 0.0
      %1012 = vmatpush.msra.mxu0 0.0
      %1013 = vmatpush.msra.mxu0 0.0
      %1014 = vmatpush.msra.mxu0 0.0
      %1015 = vmatpush.msra.mxu0 0.0
      %1016 = vmatpush.msra.mxu0 %v971
      %1017 = vmatmul.f32.gmra.mxu0 %v961
      %v1018 = vpop.f32.mrf.mxu0
      %v1019 = vadd.f32 0.0, %v1018
      %1020 = vmatmul.f32.gmra.mxu0 %v964
      %v1021 = vpop.f32.mrf.mxu0
      %v1022 = vadd.f32 0.0, %v1021
      %1023 = vmatmul.f32.gmra.mxu0 %v967
      %v1024 = vpop.f32.mrf.mxu0
      %v1025 = vadd.f32 0.0, %v1024
      %1026 = vdwg.mxu0
      %1027 = vmatpush.msra.mxu0 0.0
      %1028 = vmatpush.msra.mxu0 0.0
      %1029 = vmatpush.msra.mxu0 0.0
      %1030 = vmatpush.msra.mxu0 0.0
      %1031 = vmatpush.msra.mxu0 0.0
      %1032 = vmatpush.msra.mxu0 0.0
      %1033 = vmatpush.msra.mxu0 0.0
      %1034 = vmatpush.msra.mxu0 0.0
      %1035 = vmatpush.msra.mxu0 0.0
      %1036 = vmatpush.msra.mxu0 0.0
      %1037 = vmatpush.msra.mxu0 0.0
      %1038 = vmatpush.msra.mxu0 0.0
      %1039 = vmatpush.msra.mxu0 0.0
      %1040 = vmatpush.msra.mxu0 0.0
      %1041 = vmatpush.msra.mxu0 0.0
      %1042 = vmatpush.msra.mxu0 %v973
      %1043 = vmatmul.f32.gmra.mxu0 %v961
      %v1044 = vpop.f32.mrf.mxu0
      %v1045 = vadd.f32 0.0, %v1044
      %1046 = vmatmul.f32.gmra.mxu0 %v964
      %v1047 = vpop.f32.mrf.mxu0
      %v1048 = vadd.f32 0.0, %v1047
      %1049 = vmatmul.f32.gmra.mxu0 %v967
      %v1050 = vpop.f32.mrf.mxu0
      %v1051 = vadd.f32 0.0, %v1050
      %1052 = vdwg.mxu0
      %v1053 = vadd.f32 %v928, %v993
      %v1054 = vadd.f32 %v929, %v1019
      %v1055 = vadd.f32 %v930, %v1045
      %v1056 = vadd.f32 %v931, %v996
      %v1057 = vadd.f32 %v932, %v1022
      %v1058 = vadd.f32 %v933, %v1048
      %v1059 = vadd.f32 %v934, %v999
      %v1060 = vadd.f32 %v935, %v1025
      %v1061 = vadd.f32 %v936, %v1051
      %v1062 = vld [vmem:[%s197] sm:$0x77]
      %v1063 = vld [vmem:[%s197 + $0x8] sm:$0x7]
      %s1064 = scalar_lea.vmem %s1, 168
      %v1065 = vld [vmem:[%s1064] sm:$0xff]
      %v1066 = vld [vmem:[%s1064 + $0x8] sm:$0xff]
      %v1067 = vld [vmem:[%s1064 + $0x10] sm:$0xff]
      %1070 = vst [vmem:[#allocation1] ss:$2 sm:$0xff] %v1062
      %s1071 = scalar_lea.vmem [#allocation1], 16
      %1072 = vst [vmem:[%s1071] ss:$2 sm:$0xff] %v1063
      %v1073 = vld.sshfl [vmem:[#allocation1] sm:$0xff pattern:$0x75316420]
      %v1074 = vld.sshfl [vmem:[#allocation1 + $0x8] sm:$0xff pattern:$0x75316420]
      %v1075 = vld.sshfl [vmem:[#allocation1 + $0x10] sm:$0xff pattern:$0x75316420]
      %1076 = vrot.lane.b32.xlu0 %v1073, 74
      %v1077 = vpop.permute.xlu0 %1076
      %1078 = vrot.lane.b32.xlu0 %v1074, 74
      %v1079 = vpop.permute.xlu0 %1078
      %1080 = vrot.lane.b32.xlu0 %v1075, 74
      %v1081 = vpop.permute.xlu0 %1080
      %vm1082 = vcmask 605184
      %v1083 = vsel %vm1082, %v1077, %v1079
      %v1084 = vsel %vm1082, %v1079, %v1081
      %v1086 = vsel %vm234, %v1065, 0
      %v1089 = vsel %vm234, %v1066, 0
      %v1092 = vsel %vm234, %v1067, 0
      %v1094 = vsel %vm244, %v1083, 0
      %v1096 = vsel %vm244, %v1084, 0
      %v1098 = vsel %vm244, %v1081, 0
      %1100 = vmatpush.msra.mxu0 0.0
      %1101 = vmatpush.msra.mxu0 0.0
      %1102 = vmatpush.msra.mxu0 0.0
      %1103 = vmatpush.msra.mxu0 0.0
      %1104 = vmatpush.msra.mxu0 0.0
      %1105 = vmatpush.msra.mxu0 0.0
      %1106 = vmatpush.msra.mxu0 0.0
      %1107 = vmatpush.msra.mxu0 0.0
      %1108 = vmatpush.msra.mxu0 0.0
      %1109 = vmatpush.msra.mxu0 0.0
      %1110 = vmatpush.msra.mxu0 0.0
      %1111 = vmatpush.msra.mxu0 0.0
      %1112 = vmatpush.msra.mxu0 0.0
      %1113 = vmatpush.msra.mxu0 0.0
      %1114 = vmatpush.msra.mxu0 0.0
      %1115 = vmatpush.msra.mxu0 %v1094
      %1116 = vmatmul.f32.gmra.mxu0 %v1086
      %v1117 = vpop.f32.mrf.mxu0
      %v1118 = vadd.f32 0.0, %v1117
      %1119 = vmatmul.f32.gmra.mxu0 %v1089
      %v1120 = vpop.f32.mrf.mxu0
      %v1121 = vadd.f32 0.0, %v1120
      %1122 = vmatmul.f32.gmra.mxu0 %v1092
      %v1123 = vpop.f32.mrf.mxu0
      %v1124 = vadd.f32 0.0, %v1123
      %1125 = vdwg.mxu0
      %1126 = vmatpush.msra.mxu0 0.0
      %1127 = vmatpush.msra.mxu0 0.0
      %1128 = vmatpush.msra.mxu0 0.0
      %1129 = vmatpush.msra.mxu0 0.0
      %1130 = vmatpush.msra.mxu0 0.0
      %1131 = vmatpush.msra.mxu0 0.0
      %1132 = vmatpush.msra.mxu0 0.0
      %1133 = vmatpush.msra.mxu0 0.0
      %1134 = vmatpush.msra.mxu0 0.0
      %1135 = vmatpush.msra.mxu0 0.0
      %1136 = vmatpush.msra.mxu0 0.0
      %1137 = vmatpush.msra.mxu0 0.0
      %1138 = vmatpush.msra.mxu0 0.0
      %1139 = vmatpush.msra.mxu0 0.0
      %1140 = vmatpush.msra.mxu0 0.0
      %1141 = vmatpush.msra.mxu0 %v1096
      %1142 = vmatmul.f32.gmra.mxu0 %v1086
      %v1143 = vpop.f32.mrf.mxu0
      %v1144 = vadd.f32 0.0, %v1143
      %1145 = vmatmul.f32.gmra.mxu0 %v1089
      %v1146 = vpop.f32.mrf.mxu0
      %v1147 = vadd.f32 0.0, %v1146
      %1148 = vmatmul.f32.gmra.mxu0 %v1092
      %v1149 = vpop.f32.mrf.mxu0
      %v1150 = vadd.f32 0.0, %v1149
      %1151 = vdwg.mxu0
      %1152 = vmatpush.msra.mxu0 0.0
      %1153 = vmatpush.msra.mxu0 0.0
      %1154 = vmatpush.msra.mxu0 0.0
      %1155 = vmatpush.msra.mxu0 0.0
      %1156 = vmatpush.msra.mxu0 0.0
      %1157 = vmatpush.msra.mxu0 0.0
      %1158 = vmatpush.msra.mxu0 0.0
      %1159 = vmatpush.msra.mxu0 0.0
      %1160 = vmatpush.msra.mxu0 0.0
      %1161 = vmatpush.msra.mxu0 0.0
      %1162 = vmatpush.msra.mxu0 0.0
      %1163 = vmatpush.msra.mxu0 0.0
      %1164 = vmatpush.msra.mxu0 0.0
      %1165 = vmatpush.msra.mxu0 0.0
      %1166 = vmatpush.msra.mxu0 0.0
      %1167 = vmatpush.msra.mxu0 %v1098
      %1168 = vmatmul.f32.gmra.mxu0 %v1086
      %v1169 = vpop.f32.mrf.mxu0
      %v1170 = vadd.f32 0.0, %v1169
      %1171 = vmatmul.f32.gmra.mxu0 %v1089
      %v1172 = vpop.f32.mrf.mxu0
      %v1173 = vadd.f32 0.0, %v1172
      %1174 = vmatmul.f32.gmra.mxu0 %v1092
      %v1175 = vpop.f32.mrf.mxu0
      %v1176 = vadd.f32 0.0, %v1175
      %1177 = vdwg.mxu0
      %v1178 = vadd.f32 %v1053, %v1118
      %v1179 = vadd.f32 %v1054, %v1144
      %v1180 = vadd.f32 %v1055, %v1170
      %v1181 = vadd.f32 %v1056, %v1121
      %v1182 = vadd.f32 %v1057, %v1147
      %v1183 = vadd.f32 %v1058, %v1173
      %v1184 = vadd.f32 %v1059, %v1124
      %v1185 = vadd.f32 %v1060, %v1150
      %v1186 = vadd.f32 %v1061, %v1176
      %v1187 = vld [vmem:[%s197] sm:$0x77]
      %v1188 = vld [vmem:[%s197 + $0x8] sm:$0x7]
      %s1189 = scalar_lea.vmem %s1, 192
      %v1190 = vld [vmem:[%s1189] sm:$0xff]
      %v1191 = vld [vmem:[%s1189 + $0x8] sm:$0xff]
      %v1192 = vld [vmem:[%s1189 + $0x10] sm:$0xff]
      %1195 = vst [vmem:[#allocation1] ss:$2 sm:$0xff] %v1187
      %s1196 = scalar_lea.vmem [#allocation1], 16
      %1197 = vst [vmem:[%s1196] ss:$2 sm:$0xff] %v1188
      %v1198 = vld.sshfl [vmem:[#allocation1] sm:$0xff pattern:$0x75316420]
      %v1199 = vld.sshfl [vmem:[#allocation1 + $0x8] sm:$0xff pattern:$0x75316420]
      %v1200 = vld.sshfl [vmem:[#allocation1 + $0x10] sm:$0xff pattern:$0x75316420]
      %1201 = vrot.lane.b32.xlu0 %v1198, 73
      %v1202 = vpop.permute.xlu0 %1201
      %1203 = vrot.lane.b32.xlu0 %v1199, 73
      %v1204 = vpop.permute.xlu0 %1203
      %1205 = vrot.lane.b32.xlu0 %v1200, 73
      %v1206 = vpop.permute.xlu0 %1205
      %vm1207 = vcmask 596992
      %v1208 = vsel %vm1207, %v1202, %v1204
      %v1209 = vsel %vm1207, %v1204, %v1206
      %v1211 = vsel %vm234, %v1190, 0
      %v1214 = vsel %vm234, %v1191, 0
      %v1217 = vsel %vm234, %v1192, 0
      %v1219 = vsel %vm244, %v1208, 0
      %v1221 = vsel %vm244, %v1209, 0
      %v1223 = vsel %vm244, %v1206, 0
      %1225 = vmatpush.msra.mxu0 0.0
      %1226 = vmatpush.msra.mxu0 0.0
      %1227 = vmatpush.msra.mxu0 0.0
      %1228 = vmatpush.msra.mxu0 0.0
      %1229 = vmatpush.msra.mxu0 0.0
      %1230 = vmatpush.msra.mxu0 0.0
      %1231 = vmatpush.msra.mxu0 0.0
      %1232 = vmatpush.msra.mxu0 0.0
      %1233 = vmatpush.msra.mxu0 0.0
      %1234 = vmatpush.msra.mxu0 0.0
      %1235 = vmatpush.msra.mxu0 0.0
      %1236 = vmatpush.msra.mxu0 0.0
      %1237 = vmatpush.msra.mxu0 0.0
      %1238 = vmatpush.msra.mxu0 0.0
      %1239 = vmatpush.msra.mxu0 0.0
      %1240 = vmatpush.msra.mxu0 %v1219
      %1241 = vmatmul.f32.gmra.mxu0 %v1211
      %v1242 = vpop.f32.mrf.mxu0
      %v1243 = vadd.f32 0.0, %v1242
      %1244 = vmatmul.f32.gmra.mxu0 %v1214
      %v1245 = vpop.f32.mrf.mxu0
      %v1246 = vadd.f32 0.0, %v1245
      %1247 = vmatmul.f32.gmra.mxu0 %v1217
      %v1248 = vpop.f32.mrf.mxu0
      %v1249 = vadd.f32 0.0, %v1248
      %1250 = vdwg.mxu0
      %1251 = vmatpush.msra.mxu0 0.0
      %1252 = vmatpush.msra.mxu0 0.0
      %1253 = vmatpush.msra.mxu0 0.0
      %1254 = vmatpush.msra.mxu0 0.0
      %1255 = vmatpush.msra.mxu0 0.0
      %1256 = vmatpush.msra.mxu0 0.0
      %1257 = vmatpush.msra.mxu0 0.0
      %1258 = vmatpush.msra.mxu0 0.0
      %1259 = vmatpush.msra.mxu0 0.0
      %1260 = vmatpush.msra.mxu0 0.0
      %1261 = vmatpush.msra.mxu0 0.0
      %1262 = vmatpush.msra.mxu0 0.0
      %1263 = vmatpush.msra.mxu0 0.0
      %1264 = vmatpush.msra.mxu0 0.0
      %1265 = vmatpush.msra.mxu0 0.0
      %1266 = vmatpush.msra.mxu0 %v1221
      %1267 = vmatmul.f32.gmra.mxu0 %v1211
      %v1268 = vpop.f32.mrf.mxu0
      %v1269 = vadd.f32 0.0, %v1268
      %1270 = vmatmul.f32.gmra.mxu0 %v1214
      %v1271 = vpop.f32.mrf.mxu0
      %v1272 = vadd.f32 0.0, %v1271
      %1273 = vmatmul.f32.gmra.mxu0 %v1217
      %v1274 = vpop.f32.mrf.mxu0
      %v1275 = vadd.f32 0.0, %v1274
      %1276 = vdwg.mxu0
      %1277 = vmatpush.msra.mxu0 0.0
      %1278 = vmatpush.msra.mxu0 0.0
      %1279 = vmatpush.msra.mxu0 0.0
      %1280 = vmatpush.msra.mxu0 0.0
      %1281 = vmatpush.msra.mxu0 0.0
      %1282 = vmatpush.msra.mxu0 0.0
      %1283 = vmatpush.msra.mxu0 0.0
      %1284 = vmatpush.msra.mxu0 0.0
      %1285 = vmatpush.msra.mxu0 0.0
      %1286 = vmatpush.msra.mxu0 0.0
      %1287 = vmatpush.msra.mxu0 0.0
      %1288 = vmatpush.msra.mxu0 0.0
      %1289 = vmatpush.msra.mxu0 0.0
      %1290 = vmatpush.msra.mxu0 0.0
      %1291 = vmatpush.msra.mxu0 0.0
      %1292 = vmatpush.msra.mxu0 %v1223
      %1293 = vmatmul.f32.gmra.mxu0 %v1211
      %v1294 = vpop.f32.mrf.mxu0
      %v1295 = vadd.f32 0.0, %v1294
      %1296 = vmatmul.f32.gmra.mxu0 %v1214
      %v1297 = vpop.f32.mrf.mxu0
      %v1298 = vadd.f32 0.0, %v1297
      %1299 = vmatmul.f32.gmra.mxu0 %v1217
      %v1300 = vpop.f32.mrf.mxu0
      %v1301 = vadd.f32 0.0, %v1300
      %1302 = vdwg.mxu0
      %v1303 = vadd.f32 %v1178, %v1243
      %v1304 = vadd.f32 %v1179, %v1269
      %v1305 = vadd.f32 %v1180, %v1295
      %v1306 = vadd.f32 %v1181, %v1246
      %v1307 = vadd.f32 %v1182, %v1272
      %v1308 = vadd.f32 %v1183, %v1298
      %v1309 = vadd.f32 %v1184, %v1249
      %v1310 = vadd.f32 %v1185, %v1275
      %v1311 = vadd.f32 %v1186, %v1301
      %v1312 = vld [vmem:[%s2] sm:$0xff]
      %v1313 = vld [vmem:[%s2 + $0x8] sm:$0xff]
      %v1314 = vld [vmem:[%s2 + $0x10] sm:$0xff]
      %1316 = vset.pattern.permute.xlu0 0
      %1317 = vperm.xlu0 %1316, %v1312
      %v1318 = vpop.permute.xlu0 %1317
      %1321 = vset.pattern.permute.xlu0 0
      %1322 = vperm.xlu0 %1321, %v1313
      %v1323 = vpop.permute.xlu0 %1322
      %1326 = vset.pattern.permute.xlu0 0
      %1327 = vperm.xlu0 %1326, %v1314
      %v1328 = vpop.permute.xlu0 %1327
      %v1330 = vadd.f32 %v1303, %v1318
      %v1331 = vadd.f32 %v1304, %v1318
      %v1332 = vadd.f32 %v1305, %v1318
      %v1333 = vadd.f32 %v1306, %v1323
      %v1334 = vadd.f32 %v1307, %v1323
      %v1335 = vadd.f32 %v1308, %v1323
      %v1336 = vadd.f32 %v1309, %v1328
      %v1337 = vadd.f32 %v1310, %v1328
      %v1338 = vadd.f32 %v1311, %v1328
      %v1339 = vperm.slane %v1336, 6
      %v1340 = vperm.slane %v1337, 6
      %v1341 = vperm.slane %v1338, 6
      %v1342 = vadd.f32 %v1330, %v1339
      %v1343 = vadd.f32 %v1331, %v1340
      %v1344 = vadd.f32 %v1332, %v1341
      %v1345 = vadd.f32 %v1333, %v1339
      %v1346 = vadd.f32 %v1334, %v1340
      %v1347 = vadd.f32 %v1335, %v1341
      %v1348 = vadd.f32 %v1336, %v1339
      %v1349 = vadd.f32 %v1337, %v1340
      %v1350 = vadd.f32 %v1338, %v1341
      %v1351 = vmul.f32 %v1342, 0.5
      %v1352 = vmul.f32 %v1343, 0.5
      %v1353 = vmul.f32 %v1344, 0.5
      %v1354 = vmul.f32 %v1345, 0.5
      %v1355 = vmul.f32 %v1346, 0.5
      %v1356 = vmul.f32 %v1347, 0.5
      %v1357 = vmul.f32 %v1348, 0.5
      %v1358 = vmul.f32 %v1349, 0.5
      %v1359 = vmul.f32 %v1350, 0.5
      %1360 = vst [vmem:[%s206] sm:$0xff] %v1351
      %1361 = vst [vmem:[%s206 + $0x8] sm:$0xff] %v1352
      %vm1362 = vcmask 261120
      %1363 = vst.msk [vmem:[%s206 + $0x10] sm:$0xff] %vm1362, %v1353
      %1364 = vst [vmem:[%s206 + $0x18] sm:$0xff] %v1354
      %1365 = vst [vmem:[%s206 + $0x20] sm:$0xff] %v1355
      %1366 = vst.msk [vmem:[%s206 + $0x28] sm:$0xff] %vm1362, %v1356
      %1367 = vst [vmem:[%s206 + $0x30] sm:$0x1f] %v1357
      %1368 = vst [vmem:[%s206 + $0x38] sm:$0x1f] %v1358
      %vm1369 = vcmask 258048
      %1370 = vst.msk [vmem:[%s206 + $0x40] sm:$0x1f] %vm1369, %v1359
      %s1371 = smul.u32 3, %s19
      %p1372 = scmp.lt.s32.totalorder %s18, 1
      %s1373 = scalar_select %p1372, %s18, 1
      %p1374 = scmp.lt.s32.totalorder %s1371, 2
      %s1375 = scalar_select %p1374, %s1371, 2
      %s1376 = smul.addr %s1373, 9
      %s1377 = sadd.s32 %s1375, %s1376
      %s1378 = smul.addr %s1377, 8
      %s1379 = scalar_lea.vmem %s3, %s1378
      // Predicated region
      $region33: #{tpu_custom_call.1} parent=31 // pred_check
        %p1380 = pneg %p116
      $region34: #{tpu_custom_call.1} parent=31 // pred_check_branch
        %1382 = sbr.rel (%p1380) target = $region36
      $region35: #{tpu_custom_call.1} parent=31 // pred_region
        %s1383 = smul.u32 3, %s19
      $region36: #{tpu_custom_call.1} parent=31 // pred_fallthru
        _
    $region32: #{tpu_custom_call.1} parent=5 // pred_fallthru
      _
    %p1384 = scmp.le.s32.totalorder 2, %s9
    // Predicated region
    $region37: #{tpu_custom_call.1} parent=5 // pred_check
      %p1385 = pneg %p1384
    $region38: #{tpu_custom_call.1} parent=5 // pred_check_branch
      %1387 = sbr.rel (%p1385) target = $region40
    $region39: #{tpu_custom_call.1} parent=5 // pred_region
      %s1388 = ssub.s32 %s9, 2
      // Predicated region
      $region41: #{tpu_custom_call.1} parent=39 // pred_check
        %p1389 = pneg %p122
      $region42: #{tpu_custom_call.1} parent=39 // pred_check_branch
        %1391 = sbr.rel (%p1389) target = $region44
      $region43: #{tpu_custom_call.1} parent=39 // pred_region
        %s1392 = smul.u32 3, %s21
        %p1393 = scmp.lt.s32.totalorder %s20, 1
        %s1394 = scalar_select %p1393, %s20, 1
        %p1395 = scmp.lt.s32.totalorder %s1392, 2
        %s1396 = scalar_select %p1395, %s1392, 2
        %s1397 = smul.addr %s1394, 9
        %s1398 = sadd.s32 %s1396, %s1397
        %s1399 = smul.addr %s1398, 8
        %s1400 = scalar_lea.vmem %s3, %s1399
      $region44: #{tpu_custom_call.1} parent=39 // pred_fallthru
        _
    $region40: #{tpu_custom_call.1} parent=5 // pred_fallthru
      _
  $region6: #{tpu_custom_call.1} parent=0 // loop_footer
    %s13 = sadd.s32 1, %s9
  $region7: #{tpu_custom_call.1} parent=0 // loop_footer_branch
    %8 = sbr.rel target = $region3
  $region8: #{tpu_custom_call.1} parent=0 // loop_exit
    _

</llo_original>
